<compile_context>
chip_gen: v7x
topology: tpu7x:2x2x1
jax: 0.10.0
libtpu: 0.0.40
codegen_flags: <defaults>
</compile_context>

<pallas_src>
import jax
import jax.numpy as jnp
from jax.experimental import pallas as pl
from jax.experimental.pallas import tpu as pltpu


def _round_up(x, m):
    return ((x + m - 1) // m) * m


# ---------------------------------------------------------------------------
# Fused kernel: attention mask + embedding histogram + mean pool + pooler + head
# grid = (num_batch_tiles, num_seq_tiles); seq axis is the (arbitrary) reduction
# ---------------------------------------------------------------------------
def bert_regressor_kernel(cid_ref, vl_ref, table_ref, wp_ref, bp_ref,
                          w1_ref, b1_ref, w2_ref, b2_ref, out_ref, acc_ref):
    s = pl.program_id(1)
    n_s = pl.num_programs(1)
    tb, ts = cid_ref.shape
    vp = acc_ref.shape[-1]

    @pl.when(s == 0)
    def _init():
        acc_ref[...] = jnp.zeros_like(acc_ref)

    # Fused gen_attention_mask: position < valid_length.  Invalid positions get
    # id -1 so they hit no histogram bucket (this IS the attention mask).
    vl = vl_ref[...]                                                 # [tb, 1] int32
    pos = jax.lax.broadcasted_iota(jnp.int32, (tb, ts), 1) + s * ts  # [tb, ts]
    cid = jnp.where(pos < vl, cid_ref[...], -1)                      # [tb, ts]

    # Masked one-hot histogram over this sequence tile:
    #   buckets on sublanes, sequence on lanes -> reduction over the lane axis.
    buckets = jax.lax.broadcasted_iota(jnp.int32, (tb, vp, ts), 1)   # [tb, vp, ts]
    hits = (buckets == cid[:, None, :]).astype(jnp.float32)         # [tb, vp, ts]
    acc_ref[...] += jnp.sum(hits, axis=2)                            # [tb, vp]

    @pl.when(s == n_s - 1)
    def _finalize():
        vl_f = jnp.maximum(vl.astype(jnp.float32), 1.0)              # guard vl == 0
        # Masked mean pool of (emb[tok] + seg[seg]) == (histogram @ table) / vl.
        pooled = jnp.dot(acc_ref[...], table_ref[...],
                         preferred_element_type=jnp.float32) / vl_f  # [tb, H]
        # BERT pooler stand-in: dense + tanh (MXU matmul, f32 accumulation).
        pooler = jnp.tanh(
            jnp.dot(pooled, wp_ref[...], preferred_element_type=jnp.float32)
            + bp_ref[...])
        # TODO(synk): dr_rate defaults to None in the module -> no dropout branch.
        # Regressor head: lin1 -> ReLU.
        h = jnp.dot(pooler, w1_ref[...], preferred_element_type=jnp.float32) + b1_ref[...]
        h = jnp.maximum(h, 0.0)
        # lin2 (128 -> 1) off the MXU: VPU multiply + lane reduce (w2 is [1, 128]).
        y = jnp.sum(h * w2_ref[...], axis=-1, keepdims=True) + b2_ref[0, 0]
        # Lane-dense output slab (unmasked stores); wrapper slices column 0.
        out_ref[...] = jnp.broadcast_to(jax.nn.sigmoid(y), out_ref.shape)


# ---------------------------------------------------------------------------
# Wrapper
# ---------------------------------------------------------------------------
def bert_regressor_forward(params, token_ids, valid_length, segment_ids,
                           *, tb=64, ts=256, vmem_limit_bytes=64 * 1024 * 1024):
    B, S = token_ids.shape
    emb_table = params["emb_table"]
    seg_table = params["seg_table"]
    V, H = emb_table.shape
    n_seg = seg_table.shape[0]

    # Combined embedding table: row[t * n_seg + g] = emb_table[t] + seg_table[g]
    # (exact f32; small-vocab stand-in keeps it resident in VMEM).
    combined = (emb_table[:, None, :] + seg_table[None, :, :]).reshape(V * n_seg, H)
    vp = _round_up(V * n_seg, 128)
    combined = jnp.pad(combined, ((0, vp - V * n_seg), (0, 0)))

    # Batch tiling ("parallel" axis).  Guarantee >= 2 tiles when B allows so
    # v7x's two TensorCores both get work (no effect on single-TC v5e/v6e).
    tb = _round_up(min(tb, max(B, 1)), 8)
    Bp = _round_up(B, tb)
    if Bp // tb < 2 and Bp > 8:
        tb = _round_up((Bp + 1) // 2, 8)
        Bp = _round_up(B, tb)

    # Seq tiling ("arbitrary" reduction axis): lane-dim must be a multiple of
    # 128 unless it covers the whole (padded) sequence.
    ts = min(ts, S)
    if ts < S:
        ts = _round_up(ts, 128)
    Sp = _round_up(S, ts)

    # Only int32 ids + lengths are streamed to the kernel.
    cid = token_ids.astype(jnp.int32) * n_seg + segment_ids.astype(jnp.int32)
    cid = jnp.pad(cid, ((0, Bp - B), (0, Sp - S)))          # pad ids -> masked anyway
    vl = jnp.clip(valid_length.astype(jnp.int32), 0, S)     # clamp vl <= S
    vl = jnp.pad(vl, (0, Bp - B)).reshape(Bp, 1)

    num_bt = Bp // tb
    num_st = Sp // ts

    out = pl.pallas_call(
        bert_regressor_kernel,
        out_shape=jax.ShapeDtypeStruct((Bp, 128), jnp.float32),
        grid_spec=pltpu.PrefetchScalarGridSpec(
            num_scalar_prefetch=0,
            grid=(num_bt, num_st),
            in_specs=[
                pl.BlockSpec((tb, ts), lambda i, s: (i, s)),         # combined ids
                pl.BlockSpec((tb, 1), lambda i, s: (i, 0)),          # valid_length
                pl.BlockSpec((vp, H), lambda i, s: (0, 0)),          # combined table
                pl.BlockSpec((H, H), lambda i, s: (0, 0)),           # pooler W
                pl.BlockSpec((1, H), lambda i, s: (0, 0)),           # pooler b
                pl.BlockSpec((H, 128), lambda i, s: (0, 0)),         # lin1 W
                pl.BlockSpec((1, 128), lambda i, s: (0, 0)),         # lin1 b
                pl.BlockSpec((1, 128), lambda i, s: (0, 0)),         # lin2 W (row)
                pl.BlockSpec(memory_space=pltpu.MemorySpace.SMEM),   # lin2 b (scalar)
            ],
            out_specs=pl.BlockSpec((tb, 128), lambda i, s: (i, 0)),
            scratch_shapes=[pltpu.VMEM((tb, vp), jnp.float32)],      # histogram acc
        ),
        compiler_params=pltpu.CompilerParams(
            dimension_semantics=("parallel", "arbitrary"),
            vmem_limit_bytes=vmem_limit_bytes,
        ),
    )(cid, vl,
      combined,
      params["wp"], params["bp"],
      params["w1"], params["b1"],
      params["w2"], params["b2"])

    return out[:B, :1]


def init_params(key, vocab=64, hidden=256):
    ks = jax.random.split(key, 5)
    scale = 0.02
    return {
        "emb_table": scale * jax.random.normal(ks[0], (vocab, hidden), jnp.float32),
        "seg_table": scale * jax.random.normal(ks[1], (2, hidden), jnp.float32),
        "wp": scale * jax.random.normal(ks[2], (hidden, hidden), jnp.float32),
        "bp": jnp.zeros((1, hidden), jnp.float32),
        "w1": scale * jax.random.normal(ks[3], (hidden, 128), jnp.float32),
        "b1": jnp.zeros((1, 128), jnp.float32),
        "w2": scale * jax.random.normal(ks[4], (1, 128), jnp.float32),  # lane-dense
        "b2": jnp.zeros((1, 1), jnp.float32),
    }


if __name__ == "__main__":
    key = jax.random.PRNGKey(0)
    k_tok, k_seg, k_len, k_par = jax.random.split(key, 4)

    B, S, VOCAB, HIDDEN = 16, 256, 64, 256
    token_ids = jax.random.randint(k_tok, (B, S), 0, VOCAB, dtype=jnp.int32)
    segment_ids = jax.random.randint(k_seg, (B, S), 0, 2, dtype=jnp.int32)
    valid_length = jax.random.randint(k_len, (B,), 1, S + 1, dtype=jnp.int32)

    params = init_params(k_par, vocab=VOCAB, hidden=HIDDEN)

    # ts=128 -> a real (2 batch-tiles, 2 seq-steps) grid exercising the
    # accumulator, while keeping lane-aligned (>=128) sequence tiles.
    out = bert_regressor_forward(params, token_ids, valid_length, segment_ids,
                                 ts=128)
    out = jax.block_until_ready(out)
    assert out.shape == (B, 1) and out.dtype == jnp.float32
    assert bool(jnp.all((out >= 0.0) & (out <= 1.0)))
    print("KERNEL_OK")
</pallas_src>

<mosaic_0001>
module attributes {stable_mosaic.version = 11 : i64} {
  func.func @bert_regressor_kernel(%arg0: i32, %arg1: i32, %arg2: memref<8x128xi32, #tpu.memory_space<vmem>>, %arg3: memref<8x1xi32, #tpu.memory_space<vmem>>, %arg4: memref<128x256xf32, #tpu.memory_space<vmem>>, %arg5: memref<256x256xf32, #tpu.memory_space<vmem>>, %arg6: memref<1x256xf32, #tpu.memory_space<vmem>>, %arg7: memref<256x128xf32, #tpu.memory_space<vmem>>, %arg8: memref<1x128xf32, #tpu.memory_space<vmem>>, %arg9: memref<1x128xf32, #tpu.memory_space<vmem>>, %arg10: memref<1x1xf32, #tpu.memory_space<smem>>, %arg11: memref<8x128xf32, #tpu.memory_space<vmem>>, %arg12: memref<8x128xf32, #tpu.memory_space<vmem>>) attributes {dimension_semantics = [#tpu.dimension_semantics<parallel>, #tpu.dimension_semantics<arbitrary>], iteration_bounds = array<i64: 2, 2>, scalar_prefetch = 0 : i64, scratch_operands = 1 : i64, tpu.core_type = #tpu.core_type<tc>, window_params = [{transform_indices = @transform_0, window_bounds = array<i64: 8, 128>}, {transform_indices = @transform_1, window_bounds = array<i64: 8, 1>}, {pipeline_mode = #tpu.pipeline_mode<synchronous>, transform_indices = @transform_2, window_bounds = array<i64: 128, 256>}, {pipeline_mode = #tpu.pipeline_mode<synchronous>, transform_indices = @transform_3, window_bounds = array<i64: 256, 256>}, {pipeline_mode = #tpu.pipeline_mode<synchronous>, transform_indices = @transform_4, window_bounds = array<i64: 1, 256>}, {pipeline_mode = #tpu.pipeline_mode<synchronous>, transform_indices = @transform_5, window_bounds = array<i64: 256, 128>}, {pipeline_mode = #tpu.pipeline_mode<synchronous>, transform_indices = @transform_6, window_bounds = array<i64: 1, 128>}, {pipeline_mode = #tpu.pipeline_mode<synchronous>, transform_indices = @transform_7, window_bounds = array<i64: 1, 128>}, {transform_indices = @transform_8, window_bounds = array<i64: 1, 1>}, {transform_indices = @transform_9, window_bounds = array<i64: 8, 128>}]} {
    %c0_i32 = arith.constant 0 : i32
    %0 = arith.cmpi eq, %arg1, %c0_i32 : i32
    %1 = arith.extui %0 : i1 to i32
    %c0_i32_0 = arith.constant 0 : i32
    %2 = arith.cmpi ne, %1, %c0_i32_0 : i32
    scf.if %2 {
      %cst_9 = arith.constant 0.000000e+00 : f32
      %26 = vector.broadcast %cst_9 : f32 to vector<8x128xf32>
      %c0_10 = arith.constant 0 : index
      %c0_11 = arith.constant 0 : index
      %27 = vector.load %arg12[%c0_10, %c0_11] : memref<8x128xf32, #tpu.memory_space<vmem>>, vector<8x128xf32>
      tpu.vector_store %arg12[%c0_10, %c0_11], %26 {strides = array<i32>} : memref<8x128xf32, #tpu.memory_space<vmem>>, vector<8x128xf32>,
    } else {
    }
    %c0 = arith.constant 0 : index
    %c0_1 = arith.constant 0 : index
    %3 = vector.load %arg3[%c0, %c0_1] : memref<8x1xi32, #tpu.memory_space<vmem>>, vector<8x1xi32>
    %4 = tpu.iota {dimensions = array<i32: 1>} : vector<8x128xi32>
    %c128_i32 = arith.constant 128 : i32
    %5 = arith.muli %arg1, %c128_i32 : i32
    %6 = vector.broadcast %5 : i32 to vector<8x128xi32>
    %7 = arith.addi %4, %6 : vector<8x128xi32>
    %8 = vector.broadcast %3 : vector<8x1xi32> to vector<8x128xi32>
    %9 = arith.cmpi slt, %7, %8 : vector<8x128xi32>
    %c0_2 = arith.constant 0 : index
    %c0_3 = arith.constant 0 : index
    %10 = vector.load %arg2[%c0_2, %c0_3] : memref<8x128xi32, #tpu.memory_space<vmem>>, vector<8x128xi32>
    %c-1_i32 = arith.constant -1 : i32
    %11 = vector.broadcast %c-1_i32 : i32 to vector<8x128xi32>
    %12 = arith.select %9, %10, %11 : vector<8x128xi1>, vector<8x128xi32>
    %13 = tpu.iota {dimensions = array<i32: 1>} : vector<8x128x128xi32>
    %14 = vector.shape_cast %12 : vector<8x128xi32> to vector<8x1x128xi32>
    %15 = vector.broadcast %14 : vector<8x1x128xi32> to vector<8x128x128xi32>
    %16 = arith.cmpi eq, %13, %15 : vector<8x128x128xi32>
    %17 = arith.extui %16 : vector<8x128x128xi1> to vector<8x128x128xi32>
    %18 = arith.sitofp %17 : vector<8x128x128xi32> to vector<8x128x128xf32>
    %c0_4 = arith.constant 0 : index
    %c0_5 = arith.constant 0 : index
    %19 = vector.load %arg12[%c0_4, %c0_5] : memref<8x128xf32, #tpu.memory_space<vmem>>, vector<8x128xf32>
    %cst = arith.constant dense<0.000000e+00> : vector<8x128xf32>
    %20 = vector.multi_reduction <add>, %18, %cst [2] : vector<8x128x128xf32> to vector<8x128xf32>
    %21 = arith.addf %19, %20 : vector<8x128xf32>
    %c0_6 = arith.constant 0 : index
    %c0_7 = arith.constant 0 : index
    %22 = vector.load %arg12[%c0_6, %c0_7] : memref<8x128xf32, #tpu.memory_space<vmem>>, vector<8x128xf32>
    tpu.vector_store %arg12[%c0_6, %c0_7], %21 {strides = array<i32>} : memref<8x128xf32, #tpu.memory_space<vmem>>, vector<8x128xf32>,
    %c1_i32 = arith.constant 1 : i32
    %23 = arith.cmpi eq, %arg1, %c1_i32 : i32
    %24 = arith.extui %23 : i1 to i32
    %c0_i32_8 = arith.constant 0 : i32
    %25 = arith.cmpi ne, %24, %c0_i32_8 : i32
    scf.if %25 {
      %26 = arith.sitofp %3 : vector<8x1xi32> to vector<8x1xf32>
      %cst_9 = arith.constant 1.000000e+00 : f32
      %27 = vector.broadcast %cst_9 : f32 to vector<8x1xf32>
      %28 = arith.maximumf %26, %27 : vector<8x1xf32>
      %c0_10 = arith.constant 0 : index
      %c0_11 = arith.constant 0 : index
      %29 = vector.load %arg12[%c0_10, %c0_11] : memref<8x128xf32, #tpu.memory_space<vmem>>, vector<8x128xf32>
      %c0_12 = arith.constant 0 : index
      %c0_13 = arith.constant 0 : index
      %30 = vector.load %arg4[%c0_12, %c0_13] : memref<128x256xf32, #tpu.memory_space<vmem>>, vector<128x256xf32>
      %cst_14 = arith.constant dense<0.000000e+00> : vector<8x256xf32>
      %31 = tpu.matmul %29, %30, %cst_14 {dimension_numbers = #tpu.dot_dimension_numbers<[1], [0], [0], [1], [0, 0, 1, 1], [], []>} : vector<8x128xf32>, vector<128x256xf32>, vector<8x256xf32> -> vector<8x256xf32>
      %32 = vector.broadcast %28 : vector<8x1xf32> to vector<8x256xf32>
      %33 = arith.divf %31, %32 : vector<8x256xf32>
      %c0_15 = arith.constant 0 : index
      %c0_16 = arith.constant 0 : index
      %34 = vector.load %arg5[%c0_15, %c0_16] : memref<256x256xf32, #tpu.memory_space<vmem>>, vector<256x256xf32>
      %cst_17 = arith.constant dense<0.000000e+00> : vector<8x256xf32>
      %35 = tpu.matmul %33, %34, %cst_17 {dimension_numbers = #tpu.dot_dimension_numbers<[1], [0], [0], [1], [0, 0, 1, 1], [], []>} : vector<8x256xf32>, vector<256x256xf32>, vector<8x256xf32> -> vector<8x256xf32>
      %c0_18 = arith.constant 0 : index
      %c0_19 = arith.constant 0 : index
      %36 = vector.load %arg6[%c0_18, %c0_19] : memref<1x256xf32, #tpu.memory_space<vmem>>, vector<1x256xf32>
      %37 = vector.broadcast %36 : vector<1x256xf32> to vector<8x256xf32>
      %38 = arith.addf %35, %37 : vector<8x256xf32>
      %39 = math.tanh %38 : vector<8x256xf32>
      %c0_20 = arith.constant 0 : index
      %c0_21 = arith.constant 0 : index
      %40 = vector.load %arg7[%c0_20, %c0_21] : memref<256x128xf32, #tpu.memory_space<vmem>>, vector<256x128xf32>
      %cst_22 = arith.constant dense<0.000000e+00> : vector<8x128xf32>
      %41 = tpu.matmul %39, %40, %cst_22 {dimension_numbers = #tpu.dot_dimension_numbers<[1], [0], [0], [1], [0, 0, 1, 1], [], []>} : vector<8x256xf32>, vector<256x128xf32>, vector<8x128xf32> -> vector<8x128xf32>
      %c0_23 = arith.constant 0 : index
      %c0_24 = arith.constant 0 : index
      %42 = vector.load %arg8[%c0_23, %c0_24] : memref<1x128xf32, #tpu.memory_space<vmem>>, vector<1x128xf32>
      %43 = vector.broadcast %42 : vector<1x128xf32> to vector<8x128xf32>
      %44 = arith.addf %41, %43 : vector<8x128xf32>
      %cst_25 = arith.constant 0.000000e+00 : f32
      %45 = vector.broadcast %cst_25 : f32 to vector<8x128xf32>
      %46 = arith.maximumf %44, %45 : vector<8x128xf32>
      %c0_26 = arith.constant 0 : index
      %c0_27 = arith.constant 0 : index
      %47 = vector.load %arg9[%c0_26, %c0_27] : memref<1x128xf32, #tpu.memory_space<vmem>>, vector<1x128xf32>
      %48 = vector.broadcast %47 : vector<1x128xf32> to vector<8x128xf32>
      %49 = arith.mulf %46, %48 : vector<8x128xf32>
      %cst_28 = arith.constant dense<0.000000e+00> : vector<8xf32>
      %50 = vector.multi_reduction <add>, %49, %cst_28 [1] : vector<8x128xf32> to vector<8xf32>
      %51 = vector.shape_cast %50 : vector<8xf32> to vector<8x1xf32>
      %c0_29 = arith.constant 0 : index
      %c0_30 = arith.constant 0 : index
      %52 = memref.load %arg10[%c0_29, %c0_30] : memref<1x1xf32, #tpu.memory_space<smem>>
      %53 = vector.broadcast %52 : f32 to vector<8x1xf32>
      %54 = arith.addf %51, %53 : vector<8x1xf32>
      %55 = arith.negf %54 : vector<8x1xf32>
      %56 = math.exp %55 : vector<8x1xf32>
      %cst_31 = arith.constant 1.000000e+00 : f32
      %57 = vector.broadcast %cst_31 : f32 to vector<8x1xf32>
      %58 = arith.addf %57, %56 : vector<8x1xf32>
      %59 = arith.divf %57, %58 : vector<8x1xf32>
      %60 = vector.shape_cast %59 : vector<8x1xf32> to vector<8x1xf32>
      %61 = vector.broadcast %60 : vector<8x1xf32> to vector<8x128xf32>
      %c0_32 = arith.constant 0 : index
      %c0_33 = arith.constant 0 : index
      %62 = vector.load %arg11[%c0_32, %c0_33] : memref<8x128xf32, #tpu.memory_space<vmem>>, vector<8x128xf32>
      tpu.vector_store %arg11[%c0_32, %c0_33], %61 {strides = array<i32>} : memref<8x128xf32, #tpu.memory_space<vmem>>, vector<8x128xf32>,
    } else {
    }
    return
  }
  func.func @transform_0(%arg0: i32, %arg1: i32) -> (i32, i32) {
    %c0_i32 = arith.constant 0 : i32
    return %arg0, %arg1 : i32, i32
  }
  func.func @transform_1(%arg0: i32, %arg1: i32) -> (i32, i32) {
    %c0_i32 = arith.constant 0 : i32
    %c0_i32_0 = arith.constant 0 : i32
    return %arg0, %c0_i32 : i32, i32
  }
  func.func @transform_2(%arg0: i32, %arg1: i32) -> (i32, i32) {
    %c0_i32 = arith.constant 0 : i32
    %c0_i32_0 = arith.constant 0 : i32
    %c0_i32_1 = arith.constant 0 : i32
    return %c0_i32, %c0_i32_0 : i32, i32
  }
  func.func @transform_3(%arg0: i32, %arg1: i32) -> (i32, i32) {
    %c0_i32 = arith.constant 0 : i32
    %c0_i32_0 = arith.constant 0 : i32
    %c0_i32_1 = arith.constant 0 : i32
    return %c0_i32, %c0_i32_0 : i32, i32
  }
  func.func @transform_4(%arg0: i32, %arg1: i32) -> (i32, i32) {
    %c0_i32 = arith.constant 0 : i32
    %c0_i32_0 = arith.constant 0 : i32
    %c0_i32_1 = arith.constant 0 : i32
    return %c0_i32, %c0_i32_0 : i32, i32
  }
  func.func @transform_5(%arg0: i32, %arg1: i32) -> (i32, i32) {
    %c0_i32 = arith.constant 0 : i32
    %c0_i32_0 = arith.constant 0 : i32
    %c0_i32_1 = arith.constant 0 : i32
    return %c0_i32, %c0_i32_0 : i32, i32
  }
  func.func @transform_6(%arg0: i32, %arg1: i32) -> (i32, i32) {
    %c0_i32 = arith.constant 0 : i32
    %c0_i32_0 = arith.constant 0 : i32
    %c0_i32_1 = arith.constant 0 : i32
    return %c0_i32, %c0_i32_0 : i32, i32
  }
  func.func @transform_7(%arg0: i32, %arg1: i32) -> (i32, i32) {
    %c0_i32 = arith.constant 0 : i32
    %c0_i32_0 = arith.constant 0 : i32
    %c0_i32_1 = arith.constant 0 : i32
    return %c0_i32, %c0_i32_0 : i32, i32
  }
  func.func @transform_8(%arg0: i32, %arg1: i32) -> (i32, i32) {
    %c0_i32 = arith.constant 0 : i32
    %c0_i32_0 = arith.constant 0 : i32
    %c0_i32_1 = arith.constant 0 : i32
    return %c0_i32, %c0_i32_0 : i32, i32
  }
  func.func @transform_9(%arg0: i32, %arg1: i32) -> (i32, i32) {
    %c0_i32 = arith.constant 0 : i32
    %c0_i32_0 = arith.constant 0 : i32
    return %arg0, %c0_i32 : i32, i32
  }
}

</mosaic_0001>

<llo_original>
// kernel: tpu_custom_call.1
$region0: #{tpu_custom_call.1}
  #allocation0 [shape = 'u32[]', space=smem, size = 0x4, offset = 0x4, fixed_abs, tag = 'smem constant byte address 0x4 - core index']
  #allocation1 [shape = 'u32[144,128]{1,0:T(1,128)}', space=vmem, size = 0x12000, scoped, tag = 'internal scratch']
  #allocation2 [shape = 'f32[8,128]{1,0:T(8,128)}', space=vmem, size = 0x1000, scoped, tag = 'scratch operand']
  #allocation3 [shape = 'f32[1,1]{1,0:T(1,128)S(6)}', space=smem, size = 0x200, scoped, tag = 'scoped memory for tpu_custom_call.1']
  %s0 = inlined_call_operand.hbm [shape: s32[16,256], index: 0, kind: input, shape index: {}]
  %s1 = inlined_call_operand.hbm [shape: s32[16,1], index: 1, kind: input, shape index: {}]
  %s2 = inlined_call_operand.hbm [shape: f32[128,256], index: 2, kind: input, shape index: {}]
  %s3 = inlined_call_operand.hbm [shape: f32[256,256], index: 3, kind: input, shape index: {}]
  %s4 = inlined_call_operand.hbm [shape: f32[1,256], index: 4, kind: input, shape index: {}]
  %s5 = inlined_call_operand.hbm [shape: f32[256,128], index: 5, kind: input, shape index: {}]
  %s6 = inlined_call_operand.hbm [shape: f32[1,128], index: 6, kind: input, shape index: {}]
  %s7 = inlined_call_operand.hbm [shape: f32[1,128], index: 7, kind: input, shape index: {}]
  %s8 = inlined_call_operand.<no memory space> [shape: f32[1,1], index: 8, kind: input, shape index: {}]
  %s9 = inlined_call_operand.hbm [shape: f32[16,128], index: 9, kind: output, shape index: {}]
  %s10 = sld [smem:[#allocation0]]
  $region109: #{tpu_custom_call.1} parent=0
    _
  %s12 = ssub.s32 1, %s10
  %s13 = scalar_select 0, %s12, %s10
  %14 = sst [smem:[#allocation3]] %s8
  $region1: #{tpu_custom_call.1} parent=0
    #allocation4 [shape = 'u8[8192]{0}', space=vmem, size = 0x2000, scoped, tag = 'input window, operand 0']
    #allocation5 [shape = 's32[2]{0}', space=sflag, size = 0x8, scoped, tag = 'scoped memory for tpu_custom_call.1']
    #allocation6 [shape = 's32[2]{0}', space=sflag, size = 0x8, scoped, tag = 'scoped memory for tpu_custom_call.1']
    #allocation7 [shape = 'u8[8192]{0}', space=vmem, size = 0x2000, scoped, tag = 'input window, operand 1']
    #allocation8 [shape = 's32[2]{0}', space=sflag, size = 0x8, scoped, tag = 'scoped memory for tpu_custom_call.1']
    #allocation9 [shape = 'u8[131072]{0}', space=vmem, size = 0x20000, scoped, tag = 'input window, operand 2, single buffered']
    #allocation10 [shape = 'u8[262144]{0}', space=vmem, size = 0x40000, scoped, tag = 'input window, operand 3, single buffered']
    #allocation11 [shape = 's32[1]{0}', space=sflag, size = 0x4, scoped, tag = 'scoped memory for tpu_custom_call.1']
    #allocation12 [shape = 'u8[1024]{0}', space=vmem, size = 0x400, scoped, tag = 'input window, operand 4, single buffered']
    #allocation13 [shape = 'u8[131072]{0}', space=vmem, size = 0x20000, scoped, tag = 'input window, operand 5, single buffered']
    #allocation14 [shape = 's32[1]{0}', space=sflag, size = 0x4, scoped, tag = 'scoped memory for tpu_custom_call.1']
    #allocation15 [shape = 'u8[512]{0}', space=vmem, size = 0x400, scoped, tag = 'input window, operand 6, single buffered']
    #allocation16 [shape = 'u8[512]{0}', space=vmem, size = 0x400, scoped, tag = 'input window, operand 7, single buffered']
    #allocation17 [shape = 's32[1]{0}', space=sflag, size = 0x4, scoped, tag = 'scoped memory for tpu_custom_call.1']
    #allocation18 [shape = 'u8[8192]{0}', space=vmem, size = 0x2000, scoped, tag = 'output window, operand 0']
    %15 = vsyncpa [#allocation5], 0
    %s16 = scalar_lea.sflag [#allocation5], 1
    %17 = vsyncpa %s16, 0
    %18 = vsyncpa [#allocation8], 0
    %s19 = scalar_lea.sflag [#allocation8], 1
    %20 = vsyncpa %s19, 0
    %21 = vsyncpa [#allocation11], 0
    %22 = vsyncpa [#allocation14], 0
    %23 = vsyncpa [#allocation17], 0
    %24 = vsyncpa [#allocation6], 0
    %s25 = scalar_lea.sflag [#allocation6], 1
    %26 = vsyncpa %s25, 0
    loop: start=0, step=1, limit=6
    $region2: #{tpu_custom_call.1} parent=1 // loop_pre_header
      _
    $region3: #{tpu_custom_call.1} parent=1 // loop_header
      %s28 = sphi 0, %s32
      %p29 = scmp.ge.s32.totalorder %s28, 6
      %s35 = sphi 0, %s47
      %s36 = sphi 0, %s43
      %s37 = sphi 0, %s35
      %s38 = sphi 0, %s36
      %s39 = sphi 0, %s37
      %s40 = sphi 0, %s38
      %s52 = sphi 0, %s54
      %s55 = sphi 0, %s52
      %s56 = sphi 0, %s55
      %s72 = sphi 0, %s56
      %s78 = sphi 0, %s80
      %s81 = sphi 0, %s78
      %s82 = sphi 0, %s81
      %s98 = sphi 0, %s82
      %s102 = sphi 0, %s102
      %s104 = sphi 0, %s102
      %s105 = sphi 0, %s104
      %s119 = sphi 0, %s105
      %s123 = sphi 0, %s123
      %s125 = sphi 0, %s123
      %s126 = sphi 0, %s125
      %s140 = sphi 0, %s126
      %s144 = sphi 0, %s144
      %s146 = sphi 0, %s144
      %s147 = sphi 0, %s146
      %s161 = sphi 0, %s147
      %s165 = sphi 0, %s165
      %s167 = sphi 0, %s165
      %s168 = sphi 0, %s167
      %s182 = sphi 0, %s168
      %s186 = sphi 0, %s186
      %s188 = sphi 0, %s186
      %s189 = sphi 0, %s188
      %s203 = sphi 0, %s189
      %s207 = sphi 0, %s207
      %s209 = sphi 0, %s207
      %s210 = sphi 0, %s209
      %s224 = sphi 0, %s210
      %s228 = sphi 0, %s228
      %s230 = sphi 0, %s228
      %s231 = sphi 0, %s230
      %s245 = sphi 0, %s231
      %s251 = sphi 0, %s253
      %s254 = sphi 0, %s251
      %s255 = sphi 0, %s254
      %s271 = sphi 0, %s255
    $region4: #{tpu_custom_call.1} parent=1 // loop_header_branch
      %31 = sbr.rel (%p29) target = $region8
    $region5: #{tpu_custom_call.1} parent=1 // loop_body
      %s33 = ssub.s32 %s28, 1
      %s34 = ssub.s32 %s28, 2
      %s41 = sadd.s32 1, %s36
      %p42 = scmp.ge.s32.totalorder %s41, 2
      %s43 = scalar_select %p42, 0, %s41
      %s44 = sadd.s32 1, %s35
      %s45 = scalar_select %p42, %s44, %s35
      %p46 = scmp.ge.s32.totalorder %s45, 2
      %s47 = scalar_select %p46, 0, %s45
      %s48 = ssub.s32 %s35, %s47
      %s49 = ssub.s32 %s36, %s43
      %s50 = sor.u32 %s48, %s49
      %p51 = scmp.eq.s32.totalorder %s50, 0
      %s53 = sadd.s32 %s52, 1
      %s54 = scalar_select %p51, %s52, %s53
      %p57 = pneg %p51
      %p58 = scmp.eq.s32.totalorder %s28, 3
      %p59 = por %p57, %p58
      %p60 = scmp.ne.s32.totalorder %s52, %s55
      %p61 = scmp.eq.s32.totalorder %s28, 0
      %p62 = por %p60, %p61
      %p63 = scmp.ne.s32.totalorder %s52, %s55
      %p64 = scmp.eq.s32.totalorder %s33, 3
      %p65 = por %p63, %p64
      %p66 = scmp.ne.s32.totalorder %s55, %s56
      %p67 = scmp.eq.s32.totalorder %s33, 0
      %p68 = por %p66, %p67
      %p69 = scmp.ne.s32.totalorder %s55, %s56
      %p70 = scmp.eq.s32.totalorder %s34, 3
      %p71 = por %p69, %p70
      %p73 = scmp.ne.s32.totalorder %s56, %s72
      %p74 = scmp.eq.s32.totalorder %s34, 0
      %p75 = por %p73, %p74
      %s76 = ssub.s32 %s35, %s47
      %p77 = scmp.eq.s32.totalorder %s76, 0
      %s79 = sadd.s32 %s78, 1
      %s80 = scalar_select %p77, %s78, %s79
      %p83 = pneg %p77
      %p84 = scmp.eq.s32.totalorder %s28, 3
      %p85 = por %p83, %p84
      %p86 = scmp.ne.s32.totalorder %s78, %s81
      %p87 = scmp.eq.s32.totalorder %s28, 0
      %p88 = por %p86, %p87
      %p89 = scmp.ne.s32.totalorder %s78, %s81
      %p90 = scmp.eq.s32.totalorder %s33, 3
      %p91 = por %p89, %p90
      %p92 = scmp.ne.s32.totalorder %s81, %s82
      %p93 = scmp.eq.s32.totalorder %s33, 0
      %p94 = por %p92, %p93
      %p95 = scmp.ne.s32.totalorder %s81, %s82
      %p96 = scmp.eq.s32.totalorder %s34, 3
      %p97 = por %p95, %p96
      %p99 = scmp.ne.s32.totalorder %s82, %s98
      %p100 = scmp.eq.s32.totalorder %s34, 0
      %p101 = por %p99, %p100
      %s103 = sadd.s32 %s102, 1
      %p106 = scmp.eq.s32.totalorder %s28, 3
      %p107 = scmp.ne.s32.totalorder %s102, %s104
      %p108 = scmp.eq.s32.totalorder %s28, 0
      %p109 = por %p107, %p108
      %p110 = scmp.ne.s32.totalorder %s102, %s104
      %p111 = scmp.eq.s32.totalorder %s33, 3
      %p112 = por %p110, %p111
      %p113 = scmp.ne.s32.totalorder %s104, %s105
      %p114 = scmp.eq.s32.totalorder %s33, 0
      %p115 = por %p113, %p114
      %p116 = scmp.ne.s32.totalorder %s104, %s105
      %p117 = scmp.eq.s32.totalorder %s34, 3
      %p118 = por %p116, %p117
      %p120 = scmp.ne.s32.totalorder %s105, %s119
      %p121 = scmp.eq.s32.totalorder %s34, 0
      %p122 = por %p120, %p121
      %s124 = sadd.s32 %s123, 1
      %p127 = scmp.eq.s32.totalorder %s28, 3
      %p128 = scmp.ne.s32.totalorder %s123, %s125
      %p129 = scmp.eq.s32.totalorder %s28, 0
      %p130 = por %p128, %p129
      %p131 = scmp.ne.s32.totalorder %s123, %s125
      %p132 = scmp.eq.s32.totalorder %s33, 3
      %p133 = por %p131, %p132
      %p134 = scmp.ne.s32.totalorder %s125, %s126
      %p135 = scmp.eq.s32.totalorder %s33, 0
      %p136 = por %p134, %p135
      %p137 = scmp.ne.s32.totalorder %s125, %s126
      %p138 = scmp.eq.s32.totalorder %s34, 3
      %p139 = por %p137, %p138
      %p141 = scmp.ne.s32.totalorder %s126, %s140
      %p142 = scmp.eq.s32.totalorder %s34, 0
      %p143 = por %p141, %p142
      %s145 = sadd.s32 %s144, 1
      %p148 = scmp.eq.s32.totalorder %s28, 3
      %p149 = scmp.ne.s32.totalorder %s144, %s146
      %p150 = scmp.eq.s32.totalorder %s28, 0
      %p151 = por %p149, %p150
      %p152 = scmp.ne.s32.totalorder %s144, %s146
      %p153 = scmp.eq.s32.totalorder %s33, 3
      %p154 = por %p152, %p153
      %p155 = scmp.ne.s32.totalorder %s146, %s147
      %p156 = scmp.eq.s32.totalorder %s33, 0
      %p157 = por %p155, %p156
      %p158 = scmp.ne.s32.totalorder %s146, %s147
      %p159 = scmp.eq.s32.totalorder %s34, 3
      %p160 = por %p158, %p159
      %p162 = scmp.ne.s32.totalorder %s147, %s161
      %p163 = scmp.eq.s32.totalorder %s34, 0
      %p164 = por %p162, %p163
      %s166 = sadd.s32 %s165, 1
      %p169 = scmp.eq.s32.totalorder %s28, 3
      %p170 = scmp.ne.s32.totalorder %s165, %s167
      %p171 = scmp.eq.s32.totalorder %s28, 0
      %p172 = por %p170, %p171
      %p173 = scmp.ne.s32.totalorder %s165, %s167
      %p174 = scmp.eq.s32.totalorder %s33, 3
      %p175 = por %p173, %p174
      %p176 = scmp.ne.s32.totalorder %s167, %s168
      %p177 = scmp.eq.s32.totalorder %s33, 0
      %p178 = por %p176, %p177
      %p179 = scmp.ne.s32.totalorder %s167, %s168
      %p180 = scmp.eq.s32.totalorder %s34, 3
      %p181 = por %p179, %p180
      %p183 = scmp.ne.s32.totalorder %s168, %s182
      %p184 = scmp.eq.s32.totalorder %s34, 0
      %p185 = por %p183, %p184
      %s187 = sadd.s32 %s186, 1
      %p190 = scmp.eq.s32.totalorder %s28, 3
      %p191 = scmp.ne.s32.totalorder %s186, %s188
      %p192 = scmp.eq.s32.totalorder %s28, 0
      %p193 = por %p191, %p192
      %p194 = scmp.ne.s32.totalorder %s186, %s188
      %p195 = scmp.eq.s32.totalorder %s33, 3
      %p196 = por %p194, %p195
      %p197 = scmp.ne.s32.totalorder %s188, %s189
      %p198 = scmp.eq.s32.totalorder %s33, 0
      %p199 = por %p197, %p198
      %p200 = scmp.ne.s32.totalorder %s188, %s189
      %p201 = scmp.eq.s32.totalorder %s34, 3
      %p202 = por %p200, %p201
      %p204 = scmp.ne.s32.totalorder %s189, %s203
      %p205 = scmp.eq.s32.totalorder %s34, 0
      %p206 = por %p204, %p205
      %s208 = sadd.s32 %s207, 1
      %p211 = scmp.eq.s32.totalorder %s28, 3
      %p212 = scmp.ne.s32.totalorder %s207, %s209
      %p213 = scmp.eq.s32.totalorder %s28, 0
      %p214 = por %p212, %p213
      %p215 = scmp.ne.s32.totalorder %s207, %s209
      %p216 = scmp.eq.s32.totalorder %s33, 3
      %p217 = por %p215, %p216
      %p218 = scmp.ne.s32.totalorder %s209, %s210
      %p219 = scmp.eq.s32.totalorder %s33, 0
      %p220 = por %p218, %p219
      %p221 = scmp.ne.s32.totalorder %s209, %s210
      %p222 = scmp.eq.s32.totalorder %s34, 3
      %p223 = por %p221, %p222
      %p225 = scmp.ne.s32.totalorder %s210, %s224
      %p226 = scmp.eq.s32.totalorder %s34, 0
      %p227 = por %p225, %p226
      %s229 = sadd.s32 %s228, 1
      %p232 = scmp.eq.s32.totalorder %s28, 3
      %p233 = scmp.ne.s32.totalorder %s228, %s230
      %p234 = scmp.eq.s32.totalorder %s28, 0
      %p235 = por %p233, %p234
      %p236 = scmp.ne.s32.totalorder %s228, %s230
      %p237 = scmp.eq.s32.totalorder %s33, 3
      %p238 = por %p236, %p237
      %p239 = scmp.ne.s32.totalorder %s230, %s231
      %p240 = scmp.eq.s32.totalorder %s33, 0
      %p241 = por %p239, %p240
      %p242 = scmp.ne.s32.totalorder %s230, %s231
      %p243 = scmp.eq.s32.totalorder %s34, 3
      %p244 = por %p242, %p243
      %p246 = scmp.ne.s32.totalorder %s231, %s245
      %p247 = scmp.eq.s32.totalorder %s34, 0
      %p248 = por %p246, %p247
      %s249 = ssub.s32 %s35, %s47
      %p250 = scmp.eq.s32.totalorder %s249, 0
      %s252 = sadd.s32 %s251, 1
      %s253 = scalar_select %p250, %s251, %s252
      %p256 = pneg %p250
      %p257 = scmp.eq.s32.totalorder %s28, 3
      %p258 = por %p256, %p257
      %p259 = scmp.ne.s32.totalorder %s251, %s254
      %p260 = scmp.eq.s32.totalorder %s28, 0
      %p261 = por %p259, %p260
      %p262 = scmp.ne.s32.totalorder %s251, %s254
      %p263 = scmp.eq.s32.totalorder %s33, 3
      %p264 = por %p262, %p263
      %p265 = scmp.ne.s32.totalorder %s254, %s255
      %p266 = scmp.eq.s32.totalorder %s33, 0
      %p267 = por %p265, %p266
      %p268 = scmp.ne.s32.totalorder %s254, %s255
      %p269 = scmp.eq.s32.totalorder %s34, 3
      %p270 = por %p268, %p269
      %p272 = scmp.ne.s32.totalorder %s255, %s271
      %p273 = scmp.eq.s32.totalorder %s34, 0
      %p274 = por %p272, %p273
      %p275 = scmp.le.s32.totalorder 1, %s28
      %p276 = scmp.lt.s32.totalorder %s28, 5
      %p277 = pnand %p275, %p276
      %p278 = pneg %p277
      // Predicated region
      $region9: #{tpu_custom_call.1} parent=5 // pred_check
        _
      $region10: #{tpu_custom_call.1} parent=5 // pred_check_branch
        %280 = sbr.rel (%p277) target = $region12
      $region11: #{tpu_custom_call.1} parent=5 // pred_region
        %s281 = ssub.s32 %s28, 1
        // Predicated region
        $region13: #{tpu_custom_call.1} parent=11 // pred_check
          %p282 = pneg %p115
        $region14: #{tpu_custom_call.1} parent=11 // pred_check_branch
          %284 = sbr.rel (%p282) target = $region16
        $region15: #{tpu_custom_call.1} parent=11 // pred_region
          %s286 = ssub.s32 4096, 4096
          %287 = vsyncadd [#allocation8], %s286
          %s288 = sshll.u32 [#allocation9], 4
          %s289 = int_to_ptr.vmem [resolvable:$true] %s288
          %294 = dma.hbm_to_vmem [thread:$0]  %s2, 4096, %s289, [#allocation8], 256, 256, 16
        $region16: #{tpu_custom_call.1} parent=11 // pred_fallthru
          _
        // Predicated region
        $region17: #{tpu_custom_call.1} parent=11 // pred_check
          %p295 = pneg %p136
        $region18: #{tpu_custom_call.1} parent=11 // pred_check_branch
          %297 = sbr.rel (%p295) target = $region20
        $region19: #{tpu_custom_call.1} parent=11 // pred_region
          %s299 = ssub.s32 8192, 8192
          %300 = vsyncadd [#allocation11], %s299
          %s301 = sshll.u32 [#allocation10], 4
          %s302 = int_to_ptr.vmem [resolvable:$true] %s301
          %307 = dma.hbm_to_vmem [thread:$0]  %s3, 8192, %s302, [#allocation11], 256, 256, 16
        $region20: #{tpu_custom_call.1} parent=11 // pred_fallthru
          _
        // Predicated region
        $region21: #{tpu_custom_call.1} parent=11 // pred_check
          %p308 = pneg %p157
        $region22: #{tpu_custom_call.1} parent=11 // pred_check_branch
          %310 = sbr.rel (%p308) target = $region24
        $region23: #{tpu_custom_call.1} parent=11 // pred_region
          %s312 = ssub.s32 32, 32
          %313 = vsyncadd [#allocation11], %s312
          %s315 = sshll.u32 [#allocation12], 4
          %s316 = int_to_ptr.vmem [resolvable:$true] %s315
          %318 = dma.hbm_to_vmem [thread:$0]  %s4, 32, %s316, [#allocation11]
        $region24: #{tpu_custom_call.1} parent=11 // pred_fallthru
          _
        // Predicated region
        $region25: #{tpu_custom_call.1} parent=11 // pred_check
          %p319 = pneg %p178
        $region26: #{tpu_custom_call.1} parent=11 // pred_check_branch
          %321 = sbr.rel (%p319) target = $region28
        $region27: #{tpu_custom_call.1} parent=11 // pred_region
          %s323 = ssub.s32 4096, 4096
          %324 = vsyncadd [#allocation14], %s323
          %s325 = sshll.u32 [#allocation13], 4
          %s326 = int_to_ptr.vmem [resolvable:$true] %s325
          %331 = dma.hbm_to_vmem [thread:$0]  %s5, 4096, %s326, [#allocation14], 128, 128, 8
        $region28: #{tpu_custom_call.1} parent=11 // pred_fallthru
          _
        // Predicated region
        $region29: #{tpu_custom_call.1} parent=11 // pred_check
          %p332 = pneg %p199
        $region30: #{tpu_custom_call.1} parent=11 // pred_check_branch
          %334 = sbr.rel (%p332) target = $region32
        $region31: #{tpu_custom_call.1} parent=11 // pred_region
          %s336 = ssub.s32 16, 16
          %337 = vsyncadd [#allocation14], %s336
          %s339 = sshll.u32 [#allocation15], 4
          %s340 = int_to_ptr.vmem [resolvable:$true] %s339
          %342 = dma.hbm_to_vmem [thread:$0]  %s6, 16, %s340, [#allocation14]
        $region32: #{tpu_custom_call.1} parent=11 // pred_fallthru
          _
        // Predicated region
        $region33: #{tpu_custom_call.1} parent=11 // pred_check
          %p343 = pneg %p220
        $region34: #{tpu_custom_call.1} parent=11 // pred_check_branch
          %345 = sbr.rel (%p343) target = $region36
        $region35: #{tpu_custom_call.1} parent=11 // pred_region
          %s347 = ssub.s32 16, 16
          %348 = vsyncadd [#allocation17], %s347
          %s350 = sshll.u32 [#allocation16], 4
          %s351 = int_to_ptr.vmem [resolvable:$true] %s350
          %353 = dma.hbm_to_vmem [thread:$0]  %s7, 16, %s351, [#allocation17]
        $region36: #{tpu_custom_call.1} parent=11 // pred_fallthru
          _
        // Predicated region
        $region37: #{tpu_custom_call.1} parent=11 // pred_check
          %p354 = pneg %p241
        $region38: #{tpu_custom_call.1} parent=11 // pred_check_branch
          %356 = sbr.rel (%p354) target = $region40
        $region39: #{tpu_custom_call.1} parent=11 // pred_region
          _
        $region40: #{tpu_custom_call.1} parent=11 // pred_fallthru
          _
      $region12: #{tpu_custom_call.1} parent=5 // pred_fallthru
        _
      %p357 = scmp.lt.s32.totalorder %s28, 4
      // Predicated region
      $region41: #{tpu_custom_call.1} parent=5 // pred_check
        %p358 = pneg %p357
      $region42: #{tpu_custom_call.1} parent=5 // pred_check_branch
        %360 = sbr.rel (%p358) target = $region44
      $region43: #{tpu_custom_call.1} parent=5 // pred_region
        // Predicated region
        $region45: #{tpu_custom_call.1} parent=43 // pred_check
          %p361 = pneg %p62
        $region46: #{tpu_custom_call.1} parent=43 // pred_check_branch
          %363 = sbr.rel (%p361) target = $region48
        $region47: #{tpu_custom_call.1} parent=43 // pred_region
          %s364 = sand.u32 %s52, 1
          %s365 = scalar_lea.sflag [#allocation5], %s364
          %s366 = sand.u32 %s52, 1
          %s367 = smul.addr %s366, 8
          %s368 = scalar_lea.vmem [#allocation4], %s367
          %s370 = ssub.s32 128, 128
          %371 = vsyncadd %s365, %s370
          %s372 = smul.addr %s35, 2
          %s373 = sadd.s32 %s36, %s372
          %s374 = smul.addr %s373, 128
          %s375 = scalar_lea.hbm %s0, %s374
          %s377 = sshll.u32 %s368, 4
          %s378 = int_to_ptr.vmem [resolvable:$true] %s377
          %380 = dma.hbm_to_vmem [thread:$0]  %s375, 128, %s378, %s365
        $region48: #{tpu_custom_call.1} parent=43 // pred_fallthru
          _
        // Predicated region
        $region49: #{tpu_custom_call.1} parent=43 // pred_check
          %p381 = pneg %p88
        $region50: #{tpu_custom_call.1} parent=43 // pred_check_branch
          %383 = sbr.rel (%p381) target = $region52
        $region51: #{tpu_custom_call.1} parent=43 // pred_region
          %s384 = sand.u32 %s28, 1
          %s385 = scalar_lea.sflag [#allocation8], %s384
          %s386 = sand.u32 %s78, 1
          %s387 = smul.addr %s386, 8
          %s388 = scalar_lea.vmem [#allocation7], %s387
          %s390 = ssub.s32 128, 128
          %391 = vsyncadd %s385, %s390
          %s392 = smul.addr %s35, 128
          %s393 = scalar_lea.hbm %s1, %s392
          %s395 = sshll.u32 %s388, 4
          %s396 = int_to_ptr.vmem [resolvable:$true] %s395
          %398 = dma.hbm_to_vmem [thread:$0]  %s393, 128, %s396, %s385
        $region52: #{tpu_custom_call.1} parent=43 // pred_fallthru
          _
      $region44: #{tpu_custom_call.1} parent=5 // pred_fallthru
        _
      %p399 = scmp.le.s32.totalorder 1, %s28
      %p400 = scmp.lt.s32.totalorder %s28, 5
      %p401 = pnand %p399, %p400
      %p402 = pneg %p401
      // Predicated region
      $region53: #{tpu_custom_call.1} parent=5 // pred_check
        _
      $region54: #{tpu_custom_call.1} parent=5 // pred_check_branch
        %404 = sbr.rel (%p401) target = $region56
      $region55: #{tpu_custom_call.1} parent=5 // pred_region
        %s405 = ssub.s32 %s28, 1
        %s406 = sand.u32 %s55, 1
        %s407 = scalar_lea.sflag [#allocation5], %s406
        %s408 = sand.u32 %s55, 1
        %s409 = smul.addr %s408, 8
        %s410 = scalar_lea.vmem [#allocation4], %s409
        // Predicated region
        $region57: #{tpu_custom_call.1} parent=55 // pred_check
          %p411 = pneg %p68
        $region58: #{tpu_custom_call.1} parent=55 // pred_check_branch
          %413 = sbr.rel (%p411) target = $region60
        $region59: #{tpu_custom_call.1} parent=55 // pred_region
          %414 = dma.done %s407, 128
        $region60: #{tpu_custom_call.1} parent=55 // pred_fallthru
          _
        %s415 = sand.u32 %s33, 1
        %s416 = scalar_lea.sflag [#allocation8], %s415
        %s417 = sand.u32 %s81, 1
        %s418 = smul.addr %s417, 8
        %s419 = scalar_lea.vmem [#allocation7], %s418
        // Predicated region
        $region61: #{tpu_custom_call.1} parent=55 // pred_check
          %p420 = pneg %p94
        $region62: #{tpu_custom_call.1} parent=55 // pred_check_branch
          %422 = sbr.rel (%p420) target = $region64
        $region63: #{tpu_custom_call.1} parent=55 // pred_region
          %423 = dma.done %s416, 128
        $region64: #{tpu_custom_call.1} parent=55 // pred_fallthru
          _
        // Predicated region
        $region65: #{tpu_custom_call.1} parent=55 // pred_check
          %p424 = pneg %p115
        $region66: #{tpu_custom_call.1} parent=55 // pred_check_branch
          %426 = sbr.rel (%p424) target = $region68
        $region67: #{tpu_custom_call.1} parent=55 // pred_region
          %427 = dma.done [#allocation8], 4096
        $region68: #{tpu_custom_call.1} parent=55 // pred_fallthru
          _
        // Predicated region
        $region69: #{tpu_custom_call.1} parent=55 // pred_check
          %p428 = pneg %p136
        $region70: #{tpu_custom_call.1} parent=55 // pred_check_branch
          %430 = sbr.rel (%p428) target = $region72
        $region71: #{tpu_custom_call.1} parent=55 // pred_region
          %431 = dma.done [#allocation11], 8192
        $region72: #{tpu_custom_call.1} parent=55 // pred_fallthru
          _
        // Predicated region
        $region73: #{tpu_custom_call.1} parent=55 // pred_check
          %p432 = pneg %p157
        $region74: #{tpu_custom_call.1} parent=55 // pred_check_branch
          %434 = sbr.rel (%p432) target = $region76
        $region75: #{tpu_custom_call.1} parent=55 // pred_region
          %435 = dma.done [#allocation11], 32
        $region76: #{tpu_custom_call.1} parent=55 // pred_fallthru
          _
        // Predicated region
        $region77: #{tpu_custom_call.1} parent=55 // pred_check
          %p436 = pneg %p178
        $region78: #{tpu_custom_call.1} parent=55 // pred_check_branch
          %438 = sbr.rel (%p436) target = $region80
        $region79: #{tpu_custom_call.1} parent=55 // pred_region
          %439 = dma.done [#allocation14], 4096
        $region80: #{tpu_custom_call.1} parent=55 // pred_fallthru
          _
        // Predicated region
        $region81: #{tpu_custom_call.1} parent=55 // pred_check
          %p440 = pneg %p199
        $region82: #{tpu_custom_call.1} parent=55 // pred_check_branch
          %442 = sbr.rel (%p440) target = $region84
        $region83: #{tpu_custom_call.1} parent=55 // pred_region
          %443 = dma.done [#allocation14], 16
        $region84: #{tpu_custom_call.1} parent=55 // pred_fallthru
          _
        // Predicated region
        $region85: #{tpu_custom_call.1} parent=55 // pred_check
          %p444 = pneg %p220
        $region86: #{tpu_custom_call.1} parent=55 // pred_check_branch
          %446 = sbr.rel (%p444) target = $region88
        $region87: #{tpu_custom_call.1} parent=55 // pred_region
          %447 = dma.done [#allocation17], 16
        $region88: #{tpu_custom_call.1} parent=55 // pred_fallthru
          _
        %s448 = sand.u32 %s55, 1
        %s449 = scalar_lea.sflag [#allocation5], %s448
        %s450 = sand.u32 %s55, 1
        %s451 = smul.addr %s450, 8
        %s452 = scalar_lea.vmem [#allocation4], %s451
        %p453 = pneg %p68
        %p454 = pneg %p65
        %s455 = sand.u32 %s33, 1
        %s456 = scalar_lea.sflag [#allocation8], %s455
        %s457 = sand.u32 %s81, 1
        %s458 = smul.addr %s457, 8
        %s459 = scalar_lea.vmem [#allocation7], %s458
        %p460 = pneg %p94
        %p461 = pneg %p91
        %p462 = pneg %p115
        %p463 = pneg %p112
        %p464 = pneg %p136
        %p465 = pneg %p133
        %p466 = pneg %p157
        %p467 = pneg %p154
        %p468 = pneg %p178
        %p469 = pneg %p175
        %p470 = pneg %p199
        %p471 = pneg %p196
        %p472 = pneg %p220
        %p473 = pneg %p217
        %p474 = pneg %p241
        %p475 = pneg %p238
        %p476 = pneg %p267
        %p477 = pneg %p264
        %s478 = sand.u32 %s254, 1
        %s479 = scalar_lea.sflag [#allocation6], %s478
        %s480 = sand.u32 %s254, 1
        %s481 = smul.addr %s480, 8
        %s482 = scalar_lea.vmem [#allocation18], %s481
        %p483 = scmp.eq.s32.totalorder %s38, 0
        // Predicated region
        $region89: #{tpu_custom_call.1} parent=55 // pred_check
          %p484 = pneg %p483
        $region90: #{tpu_custom_call.1} parent=55 // pred_check_branch
          %486 = sbr.rel (%p484) target = $region92
        $region91: #{tpu_custom_call.1} parent=55 // pred_region
          %487 = vst [vmem:[#allocation2] sm:$0xff] 0.0
        $region92: #{tpu_custom_call.1} parent=55 // pred_fallthru
          _
        %v488 = vld [vmem:[%s419] sm:$0xff]
        %v489 = vlaneseq
        %v490 = vand.u32 %v489, 127
        %s491 = smul.u32 %s38, 128
        %v492 = vstv %s491
        %v493 = vadd.s32 %v490, %v492
        %494 = vset.pattern.permute.xlu0 0
        %495 = vperm.xlu0 %494, %v488
        %v496 = vpop.permute.xlu0 %495
        %vm497 = vcmp.lt.s32.totalorder %v493, %v496
        %v498 = vld [vmem:[%s410] sm:$0xff]
        %v499 = vsel %vm497, %v498, 4294967295
        %v500 = vlaneseq
        %v501 = vshrl.u32 %v500, 7
        %v502 = vadd.s32 %v501, 8
        %v503 = vadd.s32 %v501, 16
        %v504 = vadd.s32 %v501, 24
        %v505 = vadd.s32 %v501, 32
        %v506 = vadd.s32 %v501, 40
        %v507 = vadd.s32 %v501, 48
        %v508 = vadd.s32 %v501, 56
        %v509 = vadd.s32 %v501, 64
        %v510 = vadd.s32 %v501, 72
        %v511 = vadd.s32 %v501, 80
        %v512 = vadd.s32 %v501, 88
        %v513 = vadd.s32 %v501, 96
        %v514 = vadd.s32 %v501, 104
        %v515 = vadd.s32 %v501, 112
        %v516 = vadd.s32 %v501, 120
        %v517 = vcombine.high %v499, %v499
        %v519 = vunpack.c.l.s4 1966171168
        %v520 = vunpack.c.0.s8 %v519
        %v521 = vlaneseq
        %v522 = vshrl.u32 %v521, 7
        %v523 = vsub.s32 %v520, %v522
        %v524 = vrot.slane %v499, %v523
        %v526 = vunpack.c.l.s4 1966171168
        %v527 = vunpack.c.0.s8 %v526
        %v528 = vlaneseq
        %v529 = vshrl.u32 %v528, 7
        %v530 = vsub.s32 %v527, %v529
        %v531 = vrot.slane %v517, %v530
        %v532 = vcombine.high %v524, %v524
        %v533 = vcombine.high %v531, %v531
        %v535 = vunpack.c.l.s4 1966171168
        %v536 = vunpack.c.0.s8 %v535
        %v537 = vlaneseq
        %v538 = vshrl.u32 %v537, 7
        %v539 = vsub.s32 %v536, %v538
        %v540 = vrot.slane %v524, %v539
        %v542 = vunpack.c.l.s4 1966171168
        %v543 = vunpack.c.0.s8 %v542
        %v544 = vlaneseq
        %v545 = vshrl.u32 %v544, 7
        %v546 = vsub.s32 %v543, %v545
        %v547 = vrot.slane %v531, %v546
        %v549 = vunpack.c.l.s4 1966171168
        %v550 = vunpack.c.0.s8 %v549
        %v551 = vlaneseq
        %v552 = vshrl.u32 %v551, 7
        %v553 = vsub.s32 %v550, %v552
        %v554 = vrot.slane %v532, %v553
        %v556 = vunpack.c.l.s4 1966171168
        %v557 = vunpack.c.0.s8 %v556
        %v558 = vlaneseq
        %v559 = vshrl.u32 %v558, 7
        %v560 = vsub.s32 %v557, %v559
        %v561 = vrot.slane %v533, %v560
        %v562 = vcombine.high %v540, %v540
        %v563 = vcombine.high %v547, %v547
        %v564 = vcombine.high %v554, %v554
        %v565 = vcombine.high %v561, %v561
        %v566 = vlaneseq
        %v567 = vshrl.u32 %v566, 7
        %v568 = vsub.s32 0, %v567
        %v569 = vrot.slane %v540, %v568
        %v570 = vlaneseq
        %v571 = vshrl.u32 %v570, 7
        %v572 = vsub.s32 0, %v571
        %v573 = vrot.slane %v554, %v572
        %v574 = vlaneseq
        %v575 = vshrl.u32 %v574, 7
        %v576 = vsub.s32 0, %v575
        %v577 = vrot.slane %v562, %v576
        %v578 = vlaneseq
        %v579 = vshrl.u32 %v578, 7
        %v580 = vsub.s32 0, %v579
        %v581 = vrot.slane %v564, %v580
        %v582 = vlaneseq
        %v583 = vshrl.u32 %v582, 7
        %v584 = vsub.s32 0, %v583
        %v585 = vrot.slane %v547, %v584
        %v586 = vlaneseq
        %v587 = vshrl.u32 %v586, 7
        %v588 = vsub.s32 0, %v587
        %v589 = vrot.slane %v561, %v588
        %v590 = vlaneseq
        %v591 = vshrl.u32 %v590, 7
        %v592 = vsub.s32 0, %v591
        %v593 = vrot.slane %v563, %v592
        %v594 = vlaneseq
        %v595 = vshrl.u32 %v594, 7
        %v596 = vsub.s32 0, %v595
        %v597 = vrot.slane %v565, %v596
        %vm598 = vcmp.eq.s32.totalorder %v501, %v569
        %vm599 = vcmp.eq.s32.totalorder %v502, %v569
        %vm600 = vcmp.eq.s32.totalorder %v503, %v569
        %vm601 = vcmp.eq.s32.totalorder %v504, %v569
        %vm602 = vcmp.eq.s32.totalorder %v505, %v569
        %vm603 = vcmp.eq.s32.totalorder %v506, %v569
        %vm604 = vcmp.eq.s32.totalorder %v507, %v569
        %vm605 = vcmp.eq.s32.totalorder %v508, %v569
        %vm606 = vcmp.eq.s32.totalorder %v509, %v569
        %vm607 = vcmp.eq.s32.totalorder %v510, %v569
        %vm608 = vcmp.eq.s32.totalorder %v511, %v569
        %vm609 = vcmp.eq.s32.totalorder %v512, %v569
        %vm610 = vcmp.eq.s32.totalorder %v513, %v569
        %vm611 = vcmp.eq.s32.totalorder %v514, %v569
        %vm612 = vcmp.eq.s32.totalorder %v515, %v569
        %vm613 = vcmp.eq.s32.totalorder %v516, %v569
        %vm614 = vcmp.eq.s32.totalorder %v501, %v573
        %vm615 = vcmp.eq.s32.totalorder %v502, %v573
        %vm616 = vcmp.eq.s32.totalorder %v503, %v573
        %vm617 = vcmp.eq.s32.totalorder %v504, %v573
        %vm618 = vcmp.eq.s32.totalorder %v505, %v573
        %vm619 = vcmp.eq.s32.totalorder %v506, %v573
        %vm620 = vcmp.eq.s32.totalorder %v507, %v573
        %vm621 = vcmp.eq.s32.totalorder %v508, %v573
        %vm622 = vcmp.eq.s32.totalorder %v509, %v573
        %vm623 = vcmp.eq.s32.totalorder %v510, %v573
        %vm624 = vcmp.eq.s32.totalorder %v511, %v573
        %vm625 = vcmp.eq.s32.totalorder %v512, %v573
        %vm626 = vcmp.eq.s32.totalorder %v513, %v573
        %vm627 = vcmp.eq.s32.totalorder %v514, %v573
        %vm628 = vcmp.eq.s32.totalorder %v515, %v573
        %vm629 = vcmp.eq.s32.totalorder %v516, %v573
        %vm630 = vcmp.eq.s32.totalorder %v501, %v577
        %vm631 = vcmp.eq.s32.totalorder %v502, %v577
        %vm632 = vcmp.eq.s32.totalorder %v503, %v577
        %vm633 = vcmp.eq.s32.totalorder %v504, %v577
        %vm634 = vcmp.eq.s32.totalorder %v505, %v577
        %vm635 = vcmp.eq.s32.totalorder %v506, %v577
        %vm636 = vcmp.eq.s32.totalorder %v507, %v577
        %vm637 = vcmp.eq.s32.totalorder %v508, %v577
        %vm638 = vcmp.eq.s32.totalorder %v509, %v577
        %vm639 = vcmp.eq.s32.totalorder %v510, %v577
        %vm640 = vcmp.eq.s32.totalorder %v511, %v577
        %vm641 = vcmp.eq.s32.totalorder %v512, %v577
        %vm642 = vcmp.eq.s32.totalorder %v513, %v577
        %vm643 = vcmp.eq.s32.totalorder %v514, %v577
        %vm644 = vcmp.eq.s32.totalorder %v515, %v577
        %vm645 = vcmp.eq.s32.totalorder %v516, %v577
        %vm646 = vcmp.eq.s32.totalorder %v501, %v581
        %vm647 = vcmp.eq.s32.totalorder %v502, %v581
        %vm648 = vcmp.eq.s32.totalorder %v503, %v581
        %vm649 = vcmp.eq.s32.totalorder %v504, %v581
        %vm650 = vcmp.eq.s32.totalorder %v505, %v581
        %vm651 = vcmp.eq.s32.totalorder %v506, %v581
        %vm652 = vcmp.eq.s32.totalorder %v507, %v581
        %vm653 = vcmp.eq.s32.totalorder %v508, %v581
        %vm654 = vcmp.eq.s32.totalorder %v509, %v581
        %vm655 = vcmp.eq.s32.totalorder %v510, %v581
        %vm656 = vcmp.eq.s32.totalorder %v511, %v581
        %vm657 = vcmp.eq.s32.totalorder %v512, %v581
        %vm658 = vcmp.eq.s32.totalorder %v513, %v581
        %vm659 = vcmp.eq.s32.totalorder %v514, %v581
        %vm660 = vcmp.eq.s32.totalorder %v515, %v581
        %vm661 = vcmp.eq.s32.totalorder %v516, %v581
        %vm662 = vcmp.eq.s32.totalorder %v501, %v585
        %vm663 = vcmp.eq.s32.totalorder %v502, %v585
        %vm664 = vcmp.eq.s32.totalorder %v503, %v585
        %vm665 = vcmp.eq.s32.totalorder %v504, %v585
        %vm666 = vcmp.eq.s32.totalorder %v505, %v585
        %vm667 = vcmp.eq.s32.totalorder %v506, %v585
        %vm668 = vcmp.eq.s32.totalorder %v507, %v585
        %vm669 = vcmp.eq.s32.totalorder %v508, %v585
        %vm670 = vcmp.eq.s32.totalorder %v509, %v585
        %vm671 = vcmp.eq.s32.totalorder %v510, %v585
        %vm672 = vcmp.eq.s32.totalorder %v511, %v585
        %vm673 = vcmp.eq.s32.totalorder %v512, %v585
        %vm674 = vcmp.eq.s32.totalorder %v513, %v585
        %vm675 = vcmp.eq.s32.totalorder %v514, %v585
        %vm676 = vcmp.eq.s32.totalorder %v515, %v585
        %vm677 = vcmp.eq.s32.totalorder %v516, %v585
        %vm678 = vcmp.eq.s32.totalorder %v501, %v589
        %vm679 = vcmp.eq.s32.totalorder %v502, %v589
        %vm680 = vcmp.eq.s32.totalorder %v503, %v589
        %vm681 = vcmp.eq.s32.totalorder %v504, %v589
        %vm682 = vcmp.eq.s32.totalorder %v505, %v589
        %vm683 = vcmp.eq.s32.totalorder %v506, %v589
        %vm684 = vcmp.eq.s32.totalorder %v507, %v589
        %vm685 = vcmp.eq.s32.totalorder %v508, %v589
        %vm686 = vcmp.eq.s32.totalorder %v509, %v589
        %vm687 = vcmp.eq.s32.totalorder %v510, %v589
        %vm688 = vcmp.eq.s32.totalorder %v511, %v589
        %vm689 = vcmp.eq.s32.totalorder %v512, %v589
        %vm690 = vcmp.eq.s32.totalorder %v513, %v589
        %vm691 = vcmp.eq.s32.totalorder %v514, %v589
        %vm692 = vcmp.eq.s32.totalorder %v515, %v589
        %vm693 = vcmp.eq.s32.totalorder %v516, %v589
        %vm694 = vcmp.eq.s32.totalorder %v501, %v593
        %vm695 = vcmp.eq.s32.totalorder %v502, %v593
        %vm696 = vcmp.eq.s32.totalorder %v503, %v593
        %vm697 = vcmp.eq.s32.totalorder %v504, %v593
        %vm698 = vcmp.eq.s32.totalorder %v505, %v593
        %vm699 = vcmp.eq.s32.totalorder %v506, %v593
        %vm700 = vcmp.eq.s32.totalorder %v507, %v593
        %vm701 = vcmp.eq.s32.totalorder %v508, %v593
        %vm702 = vcmp.eq.s32.totalorder %v509, %v593
        %vm703 = vcmp.eq.s32.totalorder %v510, %v593
        %vm704 = vcmp.eq.s32.totalorder %v511, %v593
        %vm705 = vcmp.eq.s32.totalorder %v512, %v593
        %vm706 = vcmp.eq.s32.totalorder %v513, %v593
        %vm707 = vcmp.eq.s32.totalorder %v514, %v593
        %vm708 = vcmp.eq.s32.totalorder %v515, %v593
        %vm709 = vcmp.eq.s32.totalorder %v516, %v593
        %vm710 = vcmp.eq.s32.totalorder %v501, %v597
        %vm711 = vcmp.eq.s32.totalorder %v502, %v597
        %vm712 = vcmp.eq.s32.totalorder %v503, %v597
        %vm713 = vcmp.eq.s32.totalorder %v504, %v597
        %vm714 = vcmp.eq.s32.totalorder %v505, %v597
        %vm715 = vcmp.eq.s32.totalorder %v506, %v597
        %vm716 = vcmp.eq.s32.totalorder %v507, %v597
        %vm717 = vcmp.eq.s32.totalorder %v508, %v597
        %vm718 = vcmp.eq.s32.totalorder %v509, %v597
        %vm719 = vcmp.eq.s32.totalorder %v510, %v597
        %vm720 = vcmp.eq.s32.totalorder %v511, %v597
        %vm721 = vcmp.eq.s32.totalorder %v512, %v597
        %vm722 = vcmp.eq.s32.totalorder %v513, %v597
        %vm723 = vcmp.eq.s32.totalorder %v514, %v597
        %vm724 = vcmp.eq.s32.totalorder %v515, %v597
        %vm725 = vcmp.eq.s32.totalorder %v516, %v597
        %v726 = vsel %vm598, 1, 0
        %v727 = vsel %vm599, 1, 0
        %v728 = vsel %vm600, 1, 0
        %v729 = vsel %vm601, 1, 0
        %v730 = vsel %vm602, 1, 0
        %v731 = vsel %vm603, 1, 0
        %v732 = vsel %vm604, 1, 0
        %v733 = vsel %vm605, 1, 0
        %v734 = vsel %vm606, 1, 0
        %v735 = vsel %vm607, 1, 0
        %v736 = vsel %vm608, 1, 0
        %v737 = vsel %vm609, 1, 0
        %v738 = vsel %vm610, 1, 0
        %v739 = vsel %vm611, 1, 0
        %v740 = vsel %vm612, 1, 0
        %v741 = vsel %vm613, 1, 0
        %v742 = vsel %vm614, 1, 0
        %v743 = vsel %vm615, 1, 0
        %v744 = vsel %vm616, 1, 0
        %v745 = vsel %vm617, 1, 0
        %v746 = vsel %vm618, 1, 0
        %v747 = vsel %vm619, 1, 0
        %v748 = vsel %vm620, 1, 0
        %v749 = vsel %vm621, 1, 0
        %v750 = vsel %vm622, 1, 0
        %v751 = vsel %vm623, 1, 0
        %v752 = vsel %vm624, 1, 0
        %v753 = vsel %vm625, 1, 0
        %v754 = vsel %vm626, 1, 0
        %v755 = vsel %vm627, 1, 0
        %v756 = vsel %vm628, 1, 0
        %v757 = vsel %vm629, 1, 0
        %v758 = vsel %vm630, 1, 0
        %v759 = vsel %vm631, 1, 0
        %v760 = vsel %vm632, 1, 0
        %v761 = vsel %vm633, 1, 0
        %v762 = vsel %vm634, 1, 0
        %v763 = vsel %vm635, 1, 0
        %v764 = vsel %vm636, 1, 0
        %v765 = vsel %vm637, 1, 0
        %v766 = vsel %vm638, 1, 0
        %v767 = vsel %vm639, 1, 0
        %v768 = vsel %vm640, 1, 0
        %v769 = vsel %vm641, 1, 0
        %v770 = vsel %vm642, 1, 0
        %v771 = vsel %vm643, 1, 0
        %v772 = vsel %vm644, 1, 0
        %v773 = vsel %vm645, 1, 0
        %v774 = vsel %vm646, 1, 0
        %v775 = vsel %vm647, 1, 0
        %v776 = vsel %vm648, 1, 0
        %v777 = vsel %vm649, 1, 0
        %v778 = vsel %vm650, 1, 0
        %v779 = vsel %vm651, 1, 0
        %v780 = vsel %vm652, 1, 0
        %v781 = vsel %vm653, 1, 0
        %v782 = vsel %vm654, 1, 0
        %v783 = vsel %vm655, 1, 0
        %v784 = vsel %vm656, 1, 0
        %v785 = vsel %vm657, 1, 0
        %v786 = vsel %vm658, 1, 0
        %v787 = vsel %vm659, 1, 0
        %v788 = vsel %vm660, 1, 0
        %v789 = vsel %vm661, 1, 0
        %v790 = vsel %vm662, 1, 0
        %v791 = vsel %vm663, 1, 0
        %v792 = vsel %vm664, 1, 0
        %v793 = vsel %vm665, 1, 0
        %v794 = vsel %vm666, 1, 0
        %v795 = vsel %vm667, 1, 0
        %v796 = vsel %vm668, 1, 0
        %v797 = vsel %vm669, 1, 0
        %v798 = vsel %vm670, 1, 0
        %v799 = vsel %vm671, 1, 0
        %v800 = vsel %vm672, 1, 0
        %v801 = vsel %vm673, 1, 0
        %v802 = vsel %vm674, 1, 0
        %v803 = vsel %vm675, 1, 0
        %v804 = vsel %vm676, 1, 0
        %v805 = vsel %vm677, 1, 0
        %v806 = vsel %vm678, 1, 0
        %v807 = vsel %vm679, 1, 0
        %v808 = vsel %vm680, 1, 0
        %v809 = vsel %vm681, 1, 0
        %v810 = vsel %vm682, 1, 0
        %v811 = vsel %vm683, 1, 0
        %v812 = vsel %vm684, 1, 0
        %v813 = vsel %vm685, 1, 0
        %v814 = vsel %vm686, 1, 0
        %v815 = vsel %vm687, 1, 0
        %v816 = vsel %vm688, 1, 0
        %v817 = vsel %vm689, 1, 0
        %v818 = vsel %vm690, 1, 0
        %v819 = vsel %vm691, 1, 0
        %v820 = vsel %vm692, 1, 0
        %v821 = vsel %vm693, 1, 0
        %v822 = vsel %vm694, 1, 0
        %v823 = vsel %vm695, 1, 0
        %v824 = vsel %vm696, 1, 0
        %v825 = vsel %vm697, 1, 0
        %v826 = vsel %vm698, 1, 0
        %v827 = vsel %vm699, 1, 0
        %v828 = vsel %vm700, 1, 0
        %v829 = vsel %vm701, 1, 0
        %v830 = vsel %vm702, 1, 0
        %v831 = vsel %vm703, 1, 0
        %v832 = vsel %vm704, 1, 0
        %v833 = vsel %vm705, 1, 0
        %v834 = vsel %vm706, 1, 0
        %v835 = vsel %vm707, 1, 0
        %v836 = vsel %vm708, 1, 0
        %v837 = vsel %vm709, 1, 0
        %v838 = vsel %vm710, 1, 0
        %v839 = vsel %vm711, 1, 0
        %v840 = vsel %vm712, 1, 0
        %v841 = vsel %vm713, 1, 0
        %v842 = vsel %vm714, 1, 0
        %v843 = vsel %vm715, 1, 0
        %v844 = vsel %vm716, 1, 0
        %v845 = vsel %vm717, 1, 0
        %v846 = vsel %vm718, 1, 0
        %v847 = vsel %vm719, 1, 0
        %v848 = vsel %vm720, 1, 0
        %v849 = vsel %vm721, 1, 0
        %v850 = vsel %vm722, 1, 0
        %v851 = vsel %vm723, 1, 0
        %v852 = vsel %vm724, 1, 0
        %v853 = vsel %vm725, 1, 0
        %v854 = vcvt.s32.f32 %v726
        %v855 = vcvt.s32.f32 %v727
        %v856 = vcvt.s32.f32 %v728
        %v857 = vcvt.s32.f32 %v729
        %v858 = vcvt.s32.f32 %v730
        %v859 = vcvt.s32.f32 %v731
        %v860 = vcvt.s32.f32 %v732
        %v861 = vcvt.s32.f32 %v733
        %v862 = vcvt.s32.f32 %v734
        %v863 = vcvt.s32.f32 %v735
        %v864 = vcvt.s32.f32 %v736
        %v865 = vcvt.s32.f32 %v737
        %v866 = vcvt.s32.f32 %v738
        %v867 = vcvt.s32.f32 %v739
        %v868 = vcvt.s32.f32 %v740
        %v869 = vcvt.s32.f32 %v741
        %v870 = vcvt.s32.f32 %v742
        %v871 = vcvt.s32.f32 %v743
        %v872 = vcvt.s32.f32 %v744
        %v873 = vcvt.s32.f32 %v745
        %v874 = vcvt.s32.f32 %v746
        %v875 = vcvt.s32.f32 %v747
        %v876 = vcvt.s32.f32 %v748
        %v877 = vcvt.s32.f32 %v749
        %v878 = vcvt.s32.f32 %v750
        %v879 = vcvt.s32.f32 %v751
        %v880 = vcvt.s32.f32 %v752
        %v881 = vcvt.s32.f32 %v753
        %v882 = vcvt.s32.f32 %v754
        %v883 = vcvt.s32.f32 %v755
        %v884 = vcvt.s32.f32 %v756
        %v885 = vcvt.s32.f32 %v757
        %v886 = vcvt.s32.f32 %v758
        %v887 = vcvt.s32.f32 %v759
        %v888 = vcvt.s32.f32 %v760
        %v889 = vcvt.s32.f32 %v761
        %v890 = vcvt.s32.f32 %v762
        %v891 = vcvt.s32.f32 %v763
        %v892 = vcvt.s32.f32 %v764
        %v893 = vcvt.s32.f32 %v765
        %v894 = vcvt.s32.f32 %v766
        %v895 = vcvt.s32.f32 %v767
        %v896 = vcvt.s32.f32 %v768
        %v897 = vcvt.s32.f32 %v769
        %v898 = vcvt.s32.f32 %v770
        %v899 = vcvt.s32.f32 %v771
        %v900 = vcvt.s32.f32 %v772
        %v901 = vcvt.s32.f32 %v773
        %v902 = vcvt.s32.f32 %v774
        %v903 = vcvt.s32.f32 %v775
        %v904 = vcvt.s32.f32 %v776
        %v905 = vcvt.s32.f32 %v777
        %v906 = vcvt.s32.f32 %v778
        %v907 = vcvt.s32.f32 %v779
        %v908 = vcvt.s32.f32 %v780
        %v909 = vcvt.s32.f32 %v781
        %v910 = vcvt.s32.f32 %v782
        %v911 = vcvt.s32.f32 %v783
        %v912 = vcvt.s32.f32 %v784
        %v913 = vcvt.s32.f32 %v785
        %v914 = vcvt.s32.f32 %v786
        %v915 = vcvt.s32.f32 %v787
        %v916 = vcvt.s32.f32 %v788
        %v917 = vcvt.s32.f32 %v789
        %v918 = vcvt.s32.f32 %v790
        %v919 = vcvt.s32.f32 %v791
        %v920 = vcvt.s32.f32 %v792
        %v921 = vcvt.s32.f32 %v793
        %v922 = vcvt.s32.f32 %v794
        %v923 = vcvt.s32.f32 %v795
        %v924 = vcvt.s32.f32 %v796
        %v925 = vcvt.s32.f32 %v797
        %v926 = vcvt.s32.f32 %v798
        %v927 = vcvt.s32.f32 %v799
        %v928 = vcvt.s32.f32 %v800
        %v929 = vcvt.s32.f32 %v801
        %v930 = vcvt.s32.f32 %v802
        %v931 = vcvt.s32.f32 %v803
        %v932 = vcvt.s32.f32 %v804
        %v933 = vcvt.s32.f32 %v805
        %v934 = vcvt.s32.f32 %v806
        %v935 = vcvt.s32.f32 %v807
        %v936 = vcvt.s32.f32 %v808
        %v937 = vcvt.s32.f32 %v809
        %v938 = vcvt.s32.f32 %v810
        %v939 = vcvt.s32.f32 %v811
        %v940 = vcvt.s32.f32 %v812
        %v941 = vcvt.s32.f32 %v813
        %v942 = vcvt.s32.f32 %v814
        %v943 = vcvt.s32.f32 %v815
        %v944 = vcvt.s32.f32 %v816
        %v945 = vcvt.s32.f32 %v817
        %v946 = vcvt.s32.f32 %v818
        %v947 = vcvt.s32.f32 %v819
        %v948 = vcvt.s32.f32 %v820
        %v949 = vcvt.s32.f32 %v821
        %v950 = vcvt.s32.f32 %v822
        %v951 = vcvt.s32.f32 %v823
        %v952 = vcvt.s32.f32 %v824
        %v953 = vcvt.s32.f32 %v825
        %v954 = vcvt.s32.f32 %v826
        %v955 = vcvt.s32.f32 %v827
        %v956 = vcvt.s32.f32 %v828
        %v957 = vcvt.s32.f32 %v829
        %v958 = vcvt.s32.f32 %v830
        %v959 = vcvt.s32.f32 %v831
        %v960 = vcvt.s32.f32 %v832
        %v961 = vcvt.s32.f32 %v833
        %v962 = vcvt.s32.f32 %v834
        %v963 = vcvt.s32.f32 %v835
        %v964 = vcvt.s32.f32 %v836
        %v965 = vcvt.s32.f32 %v837
        %v966 = vcvt.s32.f32 %v838
        %v967 = vcvt.s32.f32 %v839
        %v968 = vcvt.s32.f32 %v840
        %v969 = vcvt.s32.f32 %v841
        %v970 = vcvt.s32.f32 %v842
        %v971 = vcvt.s32.f32 %v843
        %v972 = vcvt.s32.f32 %v844
        %v973 = vcvt.s32.f32 %v845
        %v974 = vcvt.s32.f32 %v846
        %v975 = vcvt.s32.f32 %v847
        %v976 = vcvt.s32.f32 %v848
        %v977 = vcvt.s32.f32 %v849
        %v978 = vcvt.s32.f32 %v850
        %v979 = vcvt.s32.f32 %v851
        %v980 = vcvt.s32.f32 %v852
        %v981 = vcvt.s32.f32 %v853
        %v982 = vld [vmem:[#allocation2] sm:$0xff]
        %983 = vadd.xlane.f32.xlu0 %v854
        %v984 = vpop.xlane.xlu0 %983
        %985 = vadd.xlane.f32.xlu0 %v855
        %v986 = vpop.xlane.xlu0 %985
        %987 = vadd.xlane.f32.xlu0 %v856
        %v988 = vpop.xlane.xlu0 %987
        %989 = vadd.xlane.f32.xlu0 %v857
        %v990 = vpop.xlane.xlu0 %989
        %991 = vadd.xlane.f32.xlu0 %v858
        %v992 = vpop.xlane.xlu0 %991
        %993 = vadd.xlane.f32.xlu0 %v859
        %v994 = vpop.xlane.xlu0 %993
        %995 = vadd.xlane.f32.xlu0 %v860
        %v996 = vpop.xlane.xlu0 %995
        %997 = vadd.xlane.f32.xlu0 %v861
        %v998 = vpop.xlane.xlu0 %997
        %999 = vadd.xlane.f32.xlu0 %v862
        %v1000 = vpop.xlane.xlu0 %999
        %1001 = vadd.xlane.f32.xlu0 %v863
        %v1002 = vpop.xlane.xlu0 %1001
        %1003 = vadd.xlane.f32.xlu0 %v864
        %v1004 = vpop.xlane.xlu0 %1003
        %1005 = vadd.xlane.f32.xlu0 %v865
        %v1006 = vpop.xlane.xlu0 %1005
        %1007 = vadd.xlane.f32.xlu0 %v866
        %v1008 = vpop.xlane.xlu0 %1007
        %1009 = vadd.xlane.f32.xlu0 %v867
        %v1010 = vpop.xlane.xlu0 %1009
        %1011 = vadd.xlane.f32.xlu0 %v868
        %v1012 = vpop.xlane.xlu0 %1011
        %1013 = vadd.xlane.f32.xlu0 %v869
        %v1014 = vpop.xlane.xlu0 %1013
        %1015 = vadd.xlane.f32.xlu0 %v870
        %v1016 = vpop.xlane.xlu0 %1015
        %1017 = vadd.xlane.f32.xlu0 %v871
        %v1018 = vpop.xlane.xlu0 %1017
        %1019 = vadd.xlane.f32.xlu0 %v872
        %v1020 = vpop.xlane.xlu0 %1019
        %1021 = vadd.xlane.f32.xlu0 %v873
        %v1022 = vpop.xlane.xlu0 %1021
        %1023 = vadd.xlane.f32.xlu0 %v874
        %v1024 = vpop.xlane.xlu0 %1023
        %1025 = vadd.xlane.f32.xlu0 %v875
        %v1026 = vpop.xlane.xlu0 %1025
        %1027 = vadd.xlane.f32.xlu0 %v876
        %v1028 = vpop.xlane.xlu0 %1027
        %1029 = vadd.xlane.f32.xlu0 %v877
        %v1030 = vpop.xlane.xlu0 %1029
        %1031 = vadd.xlane.f32.xlu0 %v878
        %v1032 = vpop.xlane.xlu0 %1031
        %1033 = vadd.xlane.f32.xlu0 %v879
        %v1034 = vpop.xlane.xlu0 %1033
        %1035 = vadd.xlane.f32.xlu0 %v880
        %v1036 = vpop.xlane.xlu0 %1035
        %1037 = vadd.xlane.f32.xlu0 %v881
        %v1038 = vpop.xlane.xlu0 %1037
        %1039 = vadd.xlane.f32.xlu0 %v882
        %v1040 = vpop.xlane.xlu0 %1039
        %1041 = vadd.xlane.f32.xlu0 %v883
        %v1042 = vpop.xlane.xlu0 %1041
        %1043 = vadd.xlane.f32.xlu0 %v884
        %v1044 = vpop.xlane.xlu0 %1043
        %1045 = vadd.xlane.f32.xlu0 %v885
        %v1046 = vpop.xlane.xlu0 %1045
        %1047 = vadd.xlane.f32.xlu0 %v886
        %v1048 = vpop.xlane.xlu0 %1047
        %1049 = vadd.xlane.f32.xlu0 %v887
        %v1050 = vpop.xlane.xlu0 %1049
        %1051 = vadd.xlane.f32.xlu0 %v888
        %v1052 = vpop.xlane.xlu0 %1051
        %1053 = vadd.xlane.f32.xlu0 %v889
        %v1054 = vpop.xlane.xlu0 %1053
        %1055 = vadd.xlane.f32.xlu0 %v890
        %v1056 = vpop.xlane.xlu0 %1055
        %1057 = vadd.xlane.f32.xlu0 %v891
        %v1058 = vpop.xlane.xlu0 %1057
        %1059 = vadd.xlane.f32.xlu0 %v892
        %v1060 = vpop.xlane.xlu0 %1059
        %1061 = vadd.xlane.f32.xlu0 %v893
        %v1062 = vpop.xlane.xlu0 %1061
        %1063 = vadd.xlane.f32.xlu0 %v894
        %v1064 = vpop.xlane.xlu0 %1063
        %1065 = vadd.xlane.f32.xlu0 %v895
        %v1066 = vpop.xlane.xlu0 %1065
        %1067 = vadd.xlane.f32.xlu0 %v896
        %v1068 = vpop.xlane.xlu0 %1067
        %1069 = vadd.xlane.f32.xlu0 %v897
        %v1070 = vpop.xlane.xlu0 %1069
        %1071 = vadd.xlane.f32.xlu0 %v898
        %v1072 = vpop.xlane.xlu0 %1071
        %1073 = vadd.xlane.f32.xlu0 %v899
        %v1074 = vpop.xlane.xlu0 %1073
        %1075 = vadd.xlane.f32.xlu0 %v900
        %v1076 = vpop.xlane.xlu0 %1075
        %1077 = vadd.xlane.f32.xlu0 %v901
        %v1078 = vpop.xlane.xlu0 %1077
        %1079 = vadd.xlane.f32.xlu0 %v902
        %v1080 = vpop.xlane.xlu0 %1079
        %1081 = vadd.xlane.f32.xlu0 %v903
        %v1082 = vpop.xlane.xlu0 %1081
        %1083 = vadd.xlane.f32.xlu0 %v904
        %v1084 = vpop.xlane.xlu0 %1083
        %1085 = vadd.xlane.f32.xlu0 %v905
        %v1086 = vpop.xlane.xlu0 %1085
        %1087 = vadd.xlane.f32.xlu0 %v906
        %v1088 = vpop.xlane.xlu0 %1087
        %1089 = vadd.xlane.f32.xlu0 %v907
        %v1090 = vpop.xlane.xlu0 %1089
        %1091 = vadd.xlane.f32.xlu0 %v908
        %v1092 = vpop.xlane.xlu0 %1091
        %1093 = vadd.xlane.f32.xlu0 %v909
        %v1094 = vpop.xlane.xlu0 %1093
        %1095 = vadd.xlane.f32.xlu0 %v910
        %v1096 = vpop.xlane.xlu0 %1095
        %1097 = vadd.xlane.f32.xlu0 %v911
        %v1098 = vpop.xlane.xlu0 %1097
        %1099 = vadd.xlane.f32.xlu0 %v912
        %v1100 = vpop.xlane.xlu0 %1099
        %1101 = vadd.xlane.f32.xlu0 %v913
        %v1102 = vpop.xlane.xlu0 %1101
        %1103 = vadd.xlane.f32.xlu0 %v914
        %v1104 = vpop.xlane.xlu0 %1103
        %1105 = vadd.xlane.f32.xlu0 %v915
        %v1106 = vpop.xlane.xlu0 %1105
        %1107 = vadd.xlane.f32.xlu0 %v916
        %v1108 = vpop.xlane.xlu0 %1107
        %1109 = vadd.xlane.f32.xlu0 %v917
        %v1110 = vpop.xlane.xlu0 %1109
        %1111 = vadd.xlane.f32.xlu0 %v918
        %v1112 = vpop.xlane.xlu0 %1111
        %1113 = vadd.xlane.f32.xlu0 %v919
        %v1114 = vpop.xlane.xlu0 %1113
        %1115 = vadd.xlane.f32.xlu0 %v920
        %v1116 = vpop.xlane.xlu0 %1115
        %1117 = vadd.xlane.f32.xlu0 %v921
        %v1118 = vpop.xlane.xlu0 %1117
        %1119 = vadd.xlane.f32.xlu0 %v922
        %v1120 = vpop.xlane.xlu0 %1119
        %1121 = vadd.xlane.f32.xlu0 %v923
        %v1122 = vpop.xlane.xlu0 %1121
        %1123 = vadd.xlane.f32.xlu0 %v924
        %v1124 = vpop.xlane.xlu0 %1123
        %1125 = vadd.xlane.f32.xlu0 %v925
        %v1126 = vpop.xlane.xlu0 %1125
        %1127 = vadd.xlane.f32.xlu0 %v926
        %v1128 = vpop.xlane.xlu0 %1127
        %1129 = vadd.xlane.f32.xlu0 %v927
        %v1130 = vpop.xlane.xlu0 %1129
        %1131 = vadd.xlane.f32.xlu0 %v928
        %v1132 = vpop.xlane.xlu0 %1131
        %1133 = vadd.xlane.f32.xlu0 %v929
        %v1134 = vpop.xlane.xlu0 %1133
        %1135 = vadd.xlane.f32.xlu0 %v930
        %v1136 = vpop.xlane.xlu0 %1135
        %1137 = vadd.xlane.f32.xlu0 %v931
        %v1138 = vpop.xlane.xlu0 %1137
        %1139 = vadd.xlane.f32.xlu0 %v932
        %v1140 = vpop.xlane.xlu0 %1139
        %1141 = vadd.xlane.f32.xlu0 %v933
        %v1142 = vpop.xlane.xlu0 %1141
        %1143 = vadd.xlane.f32.xlu0 %v934
        %v1144 = vpop.xlane.xlu0 %1143
        %1145 = vadd.xlane.f32.xlu0 %v935
        %v1146 = vpop.xlane.xlu0 %1145
        %1147 = vadd.xlane.f32.xlu0 %v936
        %v1148 = vpop.xlane.xlu0 %1147
        %1149 = vadd.xlane.f32.xlu0 %v937
        %v1150 = vpop.xlane.xlu0 %1149
        %1151 = vadd.xlane.f32.xlu0 %v938
        %v1152 = vpop.xlane.xlu0 %1151
        %1153 = vadd.xlane.f32.xlu0 %v939
        %v1154 = vpop.xlane.xlu0 %1153
        %1155 = vadd.xlane.f32.xlu0 %v940
        %v1156 = vpop.xlane.xlu0 %1155
        %1157 = vadd.xlane.f32.xlu0 %v941
        %v1158 = vpop.xlane.xlu0 %1157
        %1159 = vadd.xlane.f32.xlu0 %v942
        %v1160 = vpop.xlane.xlu0 %1159
        %1161 = vadd.xlane.f32.xlu0 %v943
        %v1162 = vpop.xlane.xlu0 %1161
        %1163 = vadd.xlane.f32.xlu0 %v944
        %v1164 = vpop.xlane.xlu0 %1163
        %1165 = vadd.xlane.f32.xlu0 %v945
        %v1166 = vpop.xlane.xlu0 %1165
        %1167 = vadd.xlane.f32.xlu0 %v946
        %v1168 = vpop.xlane.xlu0 %1167
        %1169 = vadd.xlane.f32.xlu0 %v947
        %v1170 = vpop.xlane.xlu0 %1169
        %1171 = vadd.xlane.f32.xlu0 %v948
        %v1172 = vpop.xlane.xlu0 %1171
        %1173 = vadd.xlane.f32.xlu0 %v949
        %v1174 = vpop.xlane.xlu0 %1173
        %1175 = vadd.xlane.f32.xlu0 %v950
        %v1176 = vpop.xlane.xlu0 %1175
        %1177 = vadd.xlane.f32.xlu0 %v951
        %v1178 = vpop.xlane.xlu0 %1177
        %1179 = vadd.xlane.f32.xlu0 %v952
        %v1180 = vpop.xlane.xlu0 %1179
        %1181 = vadd.xlane.f32.xlu0 %v953
        %v1182 = vpop.xlane.xlu0 %1181
        %1183 = vadd.xlane.f32.xlu0 %v954
        %v1184 = vpop.xlane.xlu0 %1183
        %1185 = vadd.xlane.f32.xlu0 %v955
        %v1186 = vpop.xlane.xlu0 %1185
        %1187 = vadd.xlane.f32.xlu0 %v956
        %v1188 = vpop.xlane.xlu0 %1187
        %1189 = vadd.xlane.f32.xlu0 %v957
        %v1190 = vpop.xlane.xlu0 %1189
        %1191 = vadd.xlane.f32.xlu0 %v958
        %v1192 = vpop.xlane.xlu0 %1191
        %1193 = vadd.xlane.f32.xlu0 %v959
        %v1194 = vpop.xlane.xlu0 %1193
        %1195 = vadd.xlane.f32.xlu0 %v960
        %v1196 = vpop.xlane.xlu0 %1195
        %1197 = vadd.xlane.f32.xlu0 %v961
        %v1198 = vpop.xlane.xlu0 %1197
        %1199 = vadd.xlane.f32.xlu0 %v962
        %v1200 = vpop.xlane.xlu0 %1199
        %1201 = vadd.xlane.f32.xlu0 %v963
        %v1202 = vpop.xlane.xlu0 %1201
        %1203 = vadd.xlane.f32.xlu0 %v964
        %v1204 = vpop.xlane.xlu0 %1203
        %1205 = vadd.xlane.f32.xlu0 %v965
        %v1206 = vpop.xlane.xlu0 %1205
        %1207 = vadd.xlane.f32.xlu0 %v966
        %v1208 = vpop.xlane.xlu0 %1207
        %1209 = vadd.xlane.f32.xlu0 %v967
        %v1210 = vpop.xlane.xlu0 %1209
        %1211 = vadd.xlane.f32.xlu0 %v968
        %v1212 = vpop.xlane.xlu0 %1211
        %1213 = vadd.xlane.f32.xlu0 %v969
        %v1214 = vpop.xlane.xlu0 %1213
        %1215 = vadd.xlane.f32.xlu0 %v970
        %v1216 = vpop.xlane.xlu0 %1215
        %1217 = vadd.xlane.f32.xlu0 %v971
        %v1218 = vpop.xlane.xlu0 %1217
        %1219 = vadd.xlane.f32.xlu0 %v972
        %v1220 = vpop.xlane.xlu0 %1219
        %1221 = vadd.xlane.f32.xlu0 %v973
        %v1222 = vpop.xlane.xlu0 %1221
        %1223 = vadd.xlane.f32.xlu0 %v974
        %v1224 = vpop.xlane.xlu0 %1223
        %1225 = vadd.xlane.f32.xlu0 %v975
        %v1226 = vpop.xlane.xlu0 %1225
        %1227 = vadd.xlane.f32.xlu0 %v976
        %v1228 = vpop.xlane.xlu0 %1227
        %1229 = vadd.xlane.f32.xlu0 %v977
        %v1230 = vpop.xlane.xlu0 %1229
        %1231 = vadd.xlane.f32.xlu0 %v978
        %v1232 = vpop.xlane.xlu0 %1231
        %1233 = vadd.xlane.f32.xlu0 %v979
        %v1234 = vpop.xlane.xlu0 %1233
        %1235 = vadd.xlane.f32.xlu0 %v980
        %v1236 = vpop.xlane.xlu0 %1235
        %1237 = vadd.xlane.f32.xlu0 %v981
        %v1238 = vpop.xlane.xlu0 %1237
        %v1367 = vlaneseq
        %v1368 = vshrl.u32 %v1367, 7
        %v1369 = vsub.s32 %v490, %v1368
        %v1370 = vrot.slane %v984, %v1369
        %v1371 = vadd.s32 %v490, 4294967288
        %v1372 = vlaneseq
        %v1373 = vshrl.u32 %v1372, 7
        %v1374 = vsub.s32 %v1371, %v1373
        %v1375 = vrot.slane %v986, %v1374
        %vm1376 = vcmask 130112
        %v1377 = vsel %vm1376, %v1375, %v1370
        %v1378 = vadd.s32 %v490, 4294967280
        %v1379 = vlaneseq
        %v1380 = vshrl.u32 %v1379, 7
        %v1381 = vsub.s32 %v1378, %v1380
        %v1382 = vrot.slane %v988, %v1381
        %vm1383 = vcmask 195712
        %v1384 = vsel %vm1383, %v1382, %v1377
        %v1385 = vadd.s32 %v490, 4294967272
        %v1386 = vlaneseq
        %v1387 = vshrl.u32 %v1386, 7
        %v1388 = vsub.s32 %v1385, %v1387
        %v1389 = vrot.slane %v990, %v1388
        %vm1390 = vcmask 261312
        %v1391 = vsel %vm1390, %v1389, %v1384
        %v1392 = vadd.s32 %v490, 4294967264
        %v1393 = vlaneseq
        %v1394 = vshrl.u32 %v1393, 7
        %v1395 = vsub.s32 %v1392, %v1394
        %v1396 = vrot.slane %v992, %v1395
        %vm1397 = vcmask 326912
        %v1398 = vsel %vm1397, %v1396, %v1391
        %v1399 = vadd.s32 %v490, 4294967256
        %v1400 = vlaneseq
        %v1401 = vshrl.u32 %v1400, 7
        %v1402 = vsub.s32 %v1399, %v1401
        %v1403 = vrot.slane %v994, %v1402
        %vm1404 = vcmask 392512
        %v1405 = vsel %vm1404, %v1403, %v1398
        %v1406 = vadd.s32 %v490, 4294967248
        %v1407 = vlaneseq
        %v1408 = vshrl.u32 %v1407, 7
        %v1409 = vsub.s32 %v1406, %v1408
        %v1410 = vrot.slane %v996, %v1409
        %vm1411 = vcmask 458112
        %v1412 = vsel %vm1411, %v1410, %v1405
        %v1413 = vadd.s32 %v490, 4294967240
        %v1414 = vlaneseq
        %v1415 = vshrl.u32 %v1414, 7
        %v1416 = vsub.s32 %v1413, %v1415
        %v1417 = vrot.slane %v998, %v1416
        %vm1418 = vcmask 523712
        %v1419 = vsel %vm1418, %v1417, %v1412
        %v1420 = vadd.s32 %v490, 4294967232
        %v1421 = vlaneseq
        %v1422 = vshrl.u32 %v1421, 7
        %v1423 = vsub.s32 %v1420, %v1422
        %v1424 = vrot.slane %v1000, %v1423
        %vm1425 = vcmask 589312
        %v1426 = vsel %vm1425, %v1424, %v1419
        %v1427 = vadd.s32 %v490, 4294967224
        %v1428 = vlaneseq
        %v1429 = vshrl.u32 %v1428, 7
        %v1430 = vsub.s32 %v1427, %v1429
        %v1431 = vrot.slane %v1002, %v1430
        %vm1432 = vcmask 654912
        %v1433 = vsel %vm1432, %v1431, %v1426
        %v1434 = vadd.s32 %v490, 4294967216
        %v1435 = vlaneseq
        %v1436 = vshrl.u32 %v1435, 7
        %v1437 = vsub.s32 %v1434, %v1436
        %v1438 = vrot.slane %v1004, %v1437
        %vm1439 = vcmask 720512
        %v1440 = vsel %vm1439, %v1438, %v1433
        %v1441 = vadd.s32 %v490, 4294967208
        %v1442 = vlaneseq
        %v1443 = vshrl.u32 %v1442, 7
        %v1444 = vsub.s32 %v1441, %v1443
        %v1445 = vrot.slane %v1006, %v1444
        %vm1446 = vcmask 786112
        %v1447 = vsel %vm1446, %v1445, %v1440
        %v1448 = vadd.s32 %v490, 4294967200
        %v1449 = vlaneseq
        %v1450 = vshrl.u32 %v1449, 7
        %v1451 = vsub.s32 %v1448, %v1450
        %v1452 = vrot.slane %v1008, %v1451
        %vm1453 = vcmask 851712
        %v1454 = vsel %vm1453, %v1452, %v1447
        %v1455 = vadd.s32 %v490, 4294967192
        %v1456 = vlaneseq
        %v1457 = vshrl.u32 %v1456, 7
        %v1458 = vsub.s32 %v1455, %v1457
        %v1459 = vrot.slane %v1010, %v1458
        %vm1460 = vcmask 917312
        %v1461 = vsel %vm1460, %v1459, %v1454
        %v1462 = vadd.s32 %v490, 4294967184
        %v1463 = vlaneseq
        %v1464 = vshrl.u32 %v1463, 7
        %v1465 = vsub.s32 %v1462, %v1464
        %v1466 = vrot.slane %v1012, %v1465
        %vm1467 = vcmask 982912
        %v1468 = vsel %vm1467, %v1466, %v1461
        %v1469 = vadd.s32 %v490, 4294967176
        %v1470 = vlaneseq
        %v1471 = vshrl.u32 %v1470, 7
        %v1472 = vsub.s32 %v1469, %v1471
        %v1473 = vrot.slane %v1014, %v1472
        %vm1474 = vcmask 1048512
        %v1475 = vsel %vm1474, %v1473, %v1468
        %v1476 = vlaneseq
        %v1477 = vshrl.u32 %v1476, 7
        %v1478 = vsub.s32 %v490, %v1477
        %v1479 = vrot.slane %v1016, %v1478
        %v1480 = vlaneseq
        %v1481 = vshrl.u32 %v1480, 7
        %v1482 = vsub.s32 %v1371, %v1481
        %v1483 = vrot.slane %v1018, %v1482
        %v1484 = vsel %vm1376, %v1483, %v1479
        %v1485 = vlaneseq
        %v1486 = vshrl.u32 %v1485, 7
        %v1487 = vsub.s32 %v1378, %v1486
        %v1488 = vrot.slane %v1020, %v1487
        %v1489 = vsel %vm1383, %v1488, %v1484
        %v1490 = vlaneseq
        %v1491 = vshrl.u32 %v1490, 7
        %v1492 = vsub.s32 %v1385, %v1491
        %v1493 = vrot.slane %v1022, %v1492
        %v1494 = vsel %vm1390, %v1493, %v1489
        %v1495 = vlaneseq
        %v1496 = vshrl.u32 %v1495, 7
        %v1497 = vsub.s32 %v1392, %v1496
        %v1498 = vrot.slane %v1024, %v1497
        %v1499 = vsel %vm1397, %v1498, %v1494
        %v1500 = vlaneseq
        %v1501 = vshrl.u32 %v1500, 7
        %v1502 = vsub.s32 %v1399, %v1501
        %v1503 = vrot.slane %v1026, %v1502
        %v1504 = vsel %vm1404, %v1503, %v1499
        %v1505 = vlaneseq
        %v1506 = vshrl.u32 %v1505, 7
        %v1507 = vsub.s32 %v1406, %v1506
        %v1508 = vrot.slane %v1028, %v1507
        %v1509 = vsel %vm1411, %v1508, %v1504
        %v1510 = vlaneseq
        %v1511 = vshrl.u32 %v1510, 7
        %v1512 = vsub.s32 %v1413, %v1511
        %v1513 = vrot.slane %v1030, %v1512
        %v1514 = vsel %vm1418, %v1513, %v1509
        %v1515 = vlaneseq
        %v1516 = vshrl.u32 %v1515, 7
        %v1517 = vsub.s32 %v1420, %v1516
        %v1518 = vrot.slane %v1032, %v1517
        %v1519 = vsel %vm1425, %v1518, %v1514
        %v1520 = vlaneseq
        %v1521 = vshrl.u32 %v1520, 7
        %v1522 = vsub.s32 %v1427, %v1521
        %v1523 = vrot.slane %v1034, %v1522
        %v1524 = vsel %vm1432, %v1523, %v1519
        %v1525 = vlaneseq
        %v1526 = vshrl.u32 %v1525, 7
        %v1527 = vsub.s32 %v1434, %v1526
        %v1528 = vrot.slane %v1036, %v1527
        %v1529 = vsel %vm1439, %v1528, %v1524
        %v1530 = vlaneseq
        %v1531 = vshrl.u32 %v1530, 7
        %v1532 = vsub.s32 %v1441, %v1531
        %v1533 = vrot.slane %v1038, %v1532
        %v1534 = vsel %vm1446, %v1533, %v1529
        %v1535 = vlaneseq
        %v1536 = vshrl.u32 %v1535, 7
        %v1537 = vsub.s32 %v1448, %v1536
        %v1538 = vrot.slane %v1040, %v1537
        %v1539 = vsel %vm1453, %v1538, %v1534
        %v1540 = vlaneseq
        %v1541 = vshrl.u32 %v1540, 7
        %v1542 = vsub.s32 %v1455, %v1541
        %v1543 = vrot.slane %v1042, %v1542
        %v1544 = vsel %vm1460, %v1543, %v1539
        %v1545 = vlaneseq
        %v1546 = vshrl.u32 %v1545, 7
        %v1547 = vsub.s32 %v1462, %v1546
        %v1548 = vrot.slane %v1044, %v1547
        %v1549 = vsel %vm1467, %v1548, %v1544
        %v1550 = vlaneseq
        %v1551 = vshrl.u32 %v1550, 7
        %v1552 = vsub.s32 %v1469, %v1551
        %v1553 = vrot.slane %v1046, %v1552
        %v1554 = vsel %vm1474, %v1553, %v1549
        %v1555 = vlaneseq
        %v1556 = vshrl.u32 %v1555, 7
        %v1557 = vsub.s32 %v490, %v1556
        %v1558 = vrot.slane %v1048, %v1557
        %v1559 = vlaneseq
        %v1560 = vshrl.u32 %v1559, 7
        %v1561 = vsub.s32 %v1371, %v1560
        %v1562 = vrot.slane %v1050, %v1561
        %v1563 = vsel %vm1376, %v1562, %v1558
        %v1564 = vlaneseq
        %v1565 = vshrl.u32 %v1564, 7
        %v1566 = vsub.s32 %v1378, %v1565
        %v1567 = vrot.slane %v1052, %v1566
        %v1568 = vsel %vm1383, %v1567, %v1563
        %v1569 = vlaneseq
        %v1570 = vshrl.u32 %v1569, 7
        %v1571 = vsub.s32 %v1385, %v1570
        %v1572 = vrot.slane %v1054, %v1571
        %v1573 = vsel %vm1390, %v1572, %v1568
        %v1574 = vlaneseq
        %v1575 = vshrl.u32 %v1574, 7
        %v1576 = vsub.s32 %v1392, %v1575
        %v1577 = vrot.slane %v1056, %v1576
        %v1578 = vsel %vm1397, %v1577, %v1573
        %v1579 = vlaneseq
        %v1580 = vshrl.u32 %v1579, 7
        %v1581 = vsub.s32 %v1399, %v1580
        %v1582 = vrot.slane %v1058, %v1581
        %v1583 = vsel %vm1404, %v1582, %v1578
        %v1584 = vlaneseq
        %v1585 = vshrl.u32 %v1584, 7
        %v1586 = vsub.s32 %v1406, %v1585
        %v1587 = vrot.slane %v1060, %v1586
        %v1588 = vsel %vm1411, %v1587, %v1583
        %v1589 = vlaneseq
        %v1590 = vshrl.u32 %v1589, 7
        %v1591 = vsub.s32 %v1413, %v1590
        %v1592 = vrot.slane %v1062, %v1591
        %v1593 = vsel %vm1418, %v1592, %v1588
        %v1594 = vlaneseq
        %v1595 = vshrl.u32 %v1594, 7
        %v1596 = vsub.s32 %v1420, %v1595
        %v1597 = vrot.slane %v1064, %v1596
        %v1598 = vsel %vm1425, %v1597, %v1593
        %v1599 = vlaneseq
        %v1600 = vshrl.u32 %v1599, 7
        %v1601 = vsub.s32 %v1427, %v1600
        %v1602 = vrot.slane %v1066, %v1601
        %v1603 = vsel %vm1432, %v1602, %v1598
        %v1604 = vlaneseq
        %v1605 = vshrl.u32 %v1604, 7
        %v1606 = vsub.s32 %v1434, %v1605
        %v1607 = vrot.slane %v1068, %v1606
        %v1608 = vsel %vm1439, %v1607, %v1603
        %v1609 = vlaneseq
        %v1610 = vshrl.u32 %v1609, 7
        %v1611 = vsub.s32 %v1441, %v1610
        %v1612 = vrot.slane %v1070, %v1611
        %v1613 = vsel %vm1446, %v1612, %v1608
        %v1614 = vlaneseq
        %v1615 = vshrl.u32 %v1614, 7
        %v1616 = vsub.s32 %v1448, %v1615
        %v1617 = vrot.slane %v1072, %v1616
        %v1618 = vsel %vm1453, %v1617, %v1613
        %v1619 = vlaneseq
        %v1620 = vshrl.u32 %v1619, 7
        %v1621 = vsub.s32 %v1455, %v1620
        %v1622 = vrot.slane %v1074, %v1621
        %v1623 = vsel %vm1460, %v1622, %v1618
        %v1624 = vlaneseq
        %v1625 = vshrl.u32 %v1624, 7
        %v1626 = vsub.s32 %v1462, %v1625
        %v1627 = vrot.slane %v1076, %v1626
        %v1628 = vsel %vm1467, %v1627, %v1623
        %v1629 = vlaneseq
        %v1630 = vshrl.u32 %v1629, 7
        %v1631 = vsub.s32 %v1469, %v1630
        %v1632 = vrot.slane %v1078, %v1631
        %v1633 = vsel %vm1474, %v1632, %v1628
        %v1634 = vlaneseq
        %v1635 = vshrl.u32 %v1634, 7
        %v1636 = vsub.s32 %v490, %v1635
        %v1637 = vrot.slane %v1080, %v1636
        %v1638 = vlaneseq
        %v1639 = vshrl.u32 %v1638, 7
        %v1640 = vsub.s32 %v1371, %v1639
        %v1641 = vrot.slane %v1082, %v1640
        %v1642 = vsel %vm1376, %v1641, %v1637
        %v1643 = vlaneseq
        %v1644 = vshrl.u32 %v1643, 7
        %v1645 = vsub.s32 %v1378, %v1644
        %v1646 = vrot.slane %v1084, %v1645
        %v1647 = vsel %vm1383, %v1646, %v1642
        %v1648 = vlaneseq
        %v1649 = vshrl.u32 %v1648, 7
        %v1650 = vsub.s32 %v1385, %v1649
        %v1651 = vrot.slane %v1086, %v1650
        %v1652 = vsel %vm1390, %v1651, %v1647
        %v1653 = vlaneseq
        %v1654 = vshrl.u32 %v1653, 7
        %v1655 = vsub.s32 %v1392, %v1654
        %v1656 = vrot.slane %v1088, %v1655
        %v1657 = vsel %vm1397, %v1656, %v1652
        %v1658 = vlaneseq
        %v1659 = vshrl.u32 %v1658, 7
        %v1660 = vsub.s32 %v1399, %v1659
        %v1661 = vrot.slane %v1090, %v1660
        %v1662 = vsel %vm1404, %v1661, %v1657
        %v1663 = vlaneseq
        %v1664 = vshrl.u32 %v1663, 7
        %v1665 = vsub.s32 %v1406, %v1664
        %v1666 = vrot.slane %v1092, %v1665
        %v1667 = vsel %vm1411, %v1666, %v1662
        %v1668 = vlaneseq
        %v1669 = vshrl.u32 %v1668, 7
        %v1670 = vsub.s32 %v1413, %v1669
        %v1671 = vrot.slane %v1094, %v1670
        %v1672 = vsel %vm1418, %v1671, %v1667
        %v1673 = vlaneseq
        %v1674 = vshrl.u32 %v1673, 7
        %v1675 = vsub.s32 %v1420, %v1674
        %v1676 = vrot.slane %v1096, %v1675
        %v1677 = vsel %vm1425, %v1676, %v1672
        %v1678 = vlaneseq
        %v1679 = vshrl.u32 %v1678, 7
        %v1680 = vsub.s32 %v1427, %v1679
        %v1681 = vrot.slane %v1098, %v1680
        %v1682 = vsel %vm1432, %v1681, %v1677
        %v1683 = vlaneseq
        %v1684 = vshrl.u32 %v1683, 7
        %v1685 = vsub.s32 %v1434, %v1684
        %v1686 = vrot.slane %v1100, %v1685
        %v1687 = vsel %vm1439, %v1686, %v1682
        %v1688 = vlaneseq
        %v1689 = vshrl.u32 %v1688, 7
        %v1690 = vsub.s32 %v1441, %v1689
        %v1691 = vrot.slane %v1102, %v1690
        %v1692 = vsel %vm1446, %v1691, %v1687
        %v1693 = vlaneseq
        %v1694 = vshrl.u32 %v1693, 7
        %v1695 = vsub.s32 %v1448, %v1694
        %v1696 = vrot.slane %v1104, %v1695
        %v1697 = vsel %vm1453, %v1696, %v1692
        %v1698 = vlaneseq
        %v1699 = vshrl.u32 %v1698, 7
        %v1700 = vsub.s32 %v1455, %v1699
        %v1701 = vrot.slane %v1106, %v1700
        %v1702 = vsel %vm1460, %v1701, %v1697
        %v1703 = vlaneseq
        %v1704 = vshrl.u32 %v1703, 7
        %v1705 = vsub.s32 %v1462, %v1704
        %v1706 = vrot.slane %v1108, %v1705
        %v1707 = vsel %vm1467, %v1706, %v1702
        %v1708 = vlaneseq
        %v1709 = vshrl.u32 %v1708, 7
        %v1710 = vsub.s32 %v1469, %v1709
        %v1711 = vrot.slane %v1110, %v1710
        %v1712 = vsel %vm1474, %v1711, %v1707
        %v1713 = vlaneseq
        %v1714 = vshrl.u32 %v1713, 7
        %v1715 = vsub.s32 %v490, %v1714
        %v1716 = vrot.slane %v1112, %v1715
        %v1717 = vlaneseq
        %v1718 = vshrl.u32 %v1717, 7
        %v1719 = vsub.s32 %v1371, %v1718
        %v1720 = vrot.slane %v1114, %v1719
        %v1721 = vsel %vm1376, %v1720, %v1716
        %v1722 = vlaneseq
        %v1723 = vshrl.u32 %v1722, 7
        %v1724 = vsub.s32 %v1378, %v1723
        %v1725 = vrot.slane %v1116, %v1724
        %v1726 = vsel %vm1383, %v1725, %v1721
        %v1727 = vlaneseq
        %v1728 = vshrl.u32 %v1727, 7
        %v1729 = vsub.s32 %v1385, %v1728
        %v1730 = vrot.slane %v1118, %v1729
        %v1731 = vsel %vm1390, %v1730, %v1726
        %v1732 = vlaneseq
        %v1733 = vshrl.u32 %v1732, 7
        %v1734 = vsub.s32 %v1392, %v1733
        %v1735 = vrot.slane %v1120, %v1734
        %v1736 = vsel %vm1397, %v1735, %v1731
        %v1737 = vlaneseq
        %v1738 = vshrl.u32 %v1737, 7
        %v1739 = vsub.s32 %v1399, %v1738
        %v1740 = vrot.slane %v1122, %v1739
        %v1741 = vsel %vm1404, %v1740, %v1736
        %v1742 = vlaneseq
        %v1743 = vshrl.u32 %v1742, 7
        %v1744 = vsub.s32 %v1406, %v1743
        %v1745 = vrot.slane %v1124, %v1744
        %v1746 = vsel %vm1411, %v1745, %v1741
        %v1747 = vlaneseq
        %v1748 = vshrl.u32 %v1747, 7
        %v1749 = vsub.s32 %v1413, %v1748
        %v1750 = vrot.slane %v1126, %v1749
        %v1751 = vsel %vm1418, %v1750, %v1746
        %v1752 = vlaneseq
        %v1753 = vshrl.u32 %v1752, 7
        %v1754 = vsub.s32 %v1420, %v1753
        %v1755 = vrot.slane %v1128, %v1754
        %v1756 = vsel %vm1425, %v1755, %v1751
        %v1757 = vlaneseq
        %v1758 = vshrl.u32 %v1757, 7
        %v1759 = vsub.s32 %v1427, %v1758
        %v1760 = vrot.slane %v1130, %v1759
        %v1761 = vsel %vm1432, %v1760, %v1756
        %v1762 = vlaneseq
        %v1763 = vshrl.u32 %v1762, 7
        %v1764 = vsub.s32 %v1434, %v1763
        %v1765 = vrot.slane %v1132, %v1764
        %v1766 = vsel %vm1439, %v1765, %v1761
        %v1767 = vlaneseq
        %v1768 = vshrl.u32 %v1767, 7
        %v1769 = vsub.s32 %v1441, %v1768
        %v1770 = vrot.slane %v1134, %v1769
        %v1771 = vsel %vm1446, %v1770, %v1766
        %v1772 = vlaneseq
        %v1773 = vshrl.u32 %v1772, 7
        %v1774 = vsub.s32 %v1448, %v1773
        %v1775 = vrot.slane %v1136, %v1774
        %v1776 = vsel %vm1453, %v1775, %v1771
        %v1777 = vlaneseq
        %v1778 = vshrl.u32 %v1777, 7
        %v1779 = vsub.s32 %v1455, %v1778
        %v1780 = vrot.slane %v1138, %v1779
        %v1781 = vsel %vm1460, %v1780, %v1776
        %v1782 = vlaneseq
        %v1783 = vshrl.u32 %v1782, 7
        %v1784 = vsub.s32 %v1462, %v1783
        %v1785 = vrot.slane %v1140, %v1784
        %v1786 = vsel %vm1467, %v1785, %v1781
        %v1787 = vlaneseq
        %v1788 = vshrl.u32 %v1787, 7
        %v1789 = vsub.s32 %v1469, %v1788
        %v1790 = vrot.slane %v1142, %v1789
        %v1791 = vsel %vm1474, %v1790, %v1786
        %v1792 = vlaneseq
        %v1793 = vshrl.u32 %v1792, 7
        %v1794 = vsub.s32 %v490, %v1793
        %v1795 = vrot.slane %v1144, %v1794
        %v1796 = vlaneseq
        %v1797 = vshrl.u32 %v1796, 7
        %v1798 = vsub.s32 %v1371, %v1797
        %v1799 = vrot.slane %v1146, %v1798
        %v1800 = vsel %vm1376, %v1799, %v1795
        %v1801 = vlaneseq
        %v1802 = vshrl.u32 %v1801, 7
        %v1803 = vsub.s32 %v1378, %v1802
        %v1804 = vrot.slane %v1148, %v1803
        %v1805 = vsel %vm1383, %v1804, %v1800
        %v1806 = vlaneseq
        %v1807 = vshrl.u32 %v1806, 7
        %v1808 = vsub.s32 %v1385, %v1807
        %v1809 = vrot.slane %v1150, %v1808
        %v1810 = vsel %vm1390, %v1809, %v1805
        %v1811 = vlaneseq
        %v1812 = vshrl.u32 %v1811, 7
        %v1813 = vsub.s32 %v1392, %v1812
        %v1814 = vrot.slane %v1152, %v1813
        %v1815 = vsel %vm1397, %v1814, %v1810
        %v1816 = vlaneseq
        %v1817 = vshrl.u32 %v1816, 7
        %v1818 = vsub.s32 %v1399, %v1817
        %v1819 = vrot.slane %v1154, %v1818
        %v1820 = vsel %vm1404, %v1819, %v1815
        %v1821 = vlaneseq
        %v1822 = vshrl.u32 %v1821, 7
        %v1823 = vsub.s32 %v1406, %v1822
        %v1824 = vrot.slane %v1156, %v1823
        %v1825 = vsel %vm1411, %v1824, %v1820
        %v1826 = vlaneseq
        %v1827 = vshrl.u32 %v1826, 7
        %v1828 = vsub.s32 %v1413, %v1827
        %v1829 = vrot.slane %v1158, %v1828
        %v1830 = vsel %vm1418, %v1829, %v1825
        %v1831 = vlaneseq
        %v1832 = vshrl.u32 %v1831, 7
        %v1833 = vsub.s32 %v1420, %v1832
        %v1834 = vrot.slane %v1160, %v1833
        %v1835 = vsel %vm1425, %v1834, %v1830
        %v1836 = vlaneseq
        %v1837 = vshrl.u32 %v1836, 7
        %v1838 = vsub.s32 %v1427, %v1837
        %v1839 = vrot.slane %v1162, %v1838
        %v1840 = vsel %vm1432, %v1839, %v1835
        %v1841 = vlaneseq
        %v1842 = vshrl.u32 %v1841, 7
        %v1843 = vsub.s32 %v1434, %v1842
        %v1844 = vrot.slane %v1164, %v1843
        %v1845 = vsel %vm1439, %v1844, %v1840
        %v1846 = vlaneseq
        %v1847 = vshrl.u32 %v1846, 7
        %v1848 = vsub.s32 %v1441, %v1847
        %v1849 = vrot.slane %v1166, %v1848
        %v1850 = vsel %vm1446, %v1849, %v1845
        %v1851 = vlaneseq
        %v1852 = vshrl.u32 %v1851, 7
        %v1853 = vsub.s32 %v1448, %v1852
        %v1854 = vrot.slane %v1168, %v1853
        %v1855 = vsel %vm1453, %v1854, %v1850
        %v1856 = vlaneseq
        %v1857 = vshrl.u32 %v1856, 7
        %v1858 = vsub.s32 %v1455, %v1857
        %v1859 = vrot.slane %v1170, %v1858
        %v1860 = vsel %vm1460, %v1859, %v1855
        %v1861 = vlaneseq
        %v1862 = vshrl.u32 %v1861, 7
        %v1863 = vsub.s32 %v1462, %v1862
        %v1864 = vrot.slane %v1172, %v1863
        %v1865 = vsel %vm1467, %v1864, %v1860
        %v1866 = vlaneseq
        %v1867 = vshrl.u32 %v1866, 7
        %v1868 = vsub.s32 %v1469, %v1867
        %v1869 = vrot.slane %v1174, %v1868
        %v1870 = vsel %vm1474, %v1869, %v1865
        %v1871 = vlaneseq
        %v1872 = vshrl.u32 %v1871, 7
        %v1873 = vsub.s32 %v490, %v1872
        %v1874 = vrot.slane %v1176, %v1873
        %v1875 = vlaneseq
        %v1876 = vshrl.u32 %v1875, 7
        %v1877 = vsub.s32 %v1371, %v1876
        %v1878 = vrot.slane %v1178, %v1877
        %v1879 = vsel %vm1376, %v1878, %v1874
        %v1880 = vlaneseq
        %v1881 = vshrl.u32 %v1880, 7
        %v1882 = vsub.s32 %v1378, %v1881
        %v1883 = vrot.slane %v1180, %v1882
        %v1884 = vsel %vm1383, %v1883, %v1879
        %v1885 = vlaneseq
        %v1886 = vshrl.u32 %v1885, 7
        %v1887 = vsub.s32 %v1385, %v1886
        %v1888 = vrot.slane %v1182, %v1887
        %v1889 = vsel %vm1390, %v1888, %v1884
        %v1890 = vlaneseq
        %v1891 = vshrl.u32 %v1890, 7
        %v1892 = vsub.s32 %v1392, %v1891
        %v1893 = vrot.slane %v1184, %v1892
        %v1894 = vsel %vm1397, %v1893, %v1889
        %v1895 = vlaneseq
        %v1896 = vshrl.u32 %v1895, 7
        %v1897 = vsub.s32 %v1399, %v1896
        %v1898 = vrot.slane %v1186, %v1897
        %v1899 = vsel %vm1404, %v1898, %v1894
        %v1900 = vlaneseq
        %v1901 = vshrl.u32 %v1900, 7
        %v1902 = vsub.s32 %v1406, %v1901
        %v1903 = vrot.slane %v1188, %v1902
        %v1904 = vsel %vm1411, %v1903, %v1899
        %v1905 = vlaneseq
        %v1906 = vshrl.u32 %v1905, 7
        %v1907 = vsub.s32 %v1413, %v1906
        %v1908 = vrot.slane %v1190, %v1907
        %v1909 = vsel %vm1418, %v1908, %v1904
        %v1910 = vlaneseq
        %v1911 = vshrl.u32 %v1910, 7
        %v1912 = vsub.s32 %v1420, %v1911
        %v1913 = vrot.slane %v1192, %v1912
        %v1914 = vsel %vm1425, %v1913, %v1909
        %v1915 = vlaneseq
        %v1916 = vshrl.u32 %v1915, 7
        %v1917 = vsub.s32 %v1427, %v1916
        %v1918 = vrot.slane %v1194, %v1917
        %v1919 = vsel %vm1432, %v1918, %v1914
        %v1920 = vlaneseq
        %v1921 = vshrl.u32 %v1920, 7
        %v1922 = vsub.s32 %v1434, %v1921
        %v1923 = vrot.slane %v1196, %v1922
        %v1924 = vsel %vm1439, %v1923, %v1919
        %v1925 = vlaneseq
        %v1926 = vshrl.u32 %v1925, 7
        %v1927 = vsub.s32 %v1441, %v1926
        %v1928 = vrot.slane %v1198, %v1927
        %v1929 = vsel %vm1446, %v1928, %v1924
        %v1930 = vlaneseq
        %v1931 = vshrl.u32 %v1930, 7
        %v1932 = vsub.s32 %v1448, %v1931
        %v1933 = vrot.slane %v1200, %v1932
        %v1934 = vsel %vm1453, %v1933, %v1929
        %v1935 = vlaneseq
        %v1936 = vshrl.u32 %v1935, 7
        %v1937 = vsub.s32 %v1455, %v1936
        %v1938 = vrot.slane %v1202, %v1937
        %v1939 = vsel %vm1460, %v1938, %v1934
        %v1940 = vlaneseq
        %v1941 = vshrl.u32 %v1940, 7
        %v1942 = vsub.s32 %v1462, %v1941
        %v1943 = vrot.slane %v1204, %v1942
        %v1944 = vsel %vm1467, %v1943, %v1939
        %v1945 = vlaneseq
        %v1946 = vshrl.u32 %v1945, 7
        %v1947 = vsub.s32 %v1469, %v1946
        %v1948 = vrot.slane %v1206, %v1947
        %v1949 = vsel %vm1474, %v1948, %v1944
        %v1950 = vlaneseq
        %v1951 = vshrl.u32 %v1950, 7
        %v1952 = vsub.s32 %v490, %v1951
        %v1953 = vrot.slane %v1208, %v1952
        %v1954 = vlaneseq
        %v1955 = vshrl.u32 %v1954, 7
        %v1956 = vsub.s32 %v1371, %v1955
        %v1957 = vrot.slane %v1210, %v1956
        %v1958 = vsel %vm1376, %v1957, %v1953
        %v1959 = vlaneseq
        %v1960 = vshrl.u32 %v1959, 7
        %v1961 = vsub.s32 %v1378, %v1960
        %v1962 = vrot.slane %v1212, %v1961
        %v1963 = vsel %vm1383, %v1962, %v1958
        %v1964 = vlaneseq
        %v1965 = vshrl.u32 %v1964, 7
        %v1966 = vsub.s32 %v1385, %v1965
        %v1967 = vrot.slane %v1214, %v1966
        %v1968 = vsel %vm1390, %v1967, %v1963
        %v1969 = vlaneseq
        %v1970 = vshrl.u32 %v1969, 7
        %v1971 = vsub.s32 %v1392, %v1970
        %v1972 = vrot.slane %v1216, %v1971
        %v1973 = vsel %vm1397, %v1972, %v1968
        %v1974 = vlaneseq
        %v1975 = vshrl.u32 %v1974, 7
        %v1976 = vsub.s32 %v1399, %v1975
        %v1977 = vrot.slane %v1218, %v1976
        %v1978 = vsel %vm1404, %v1977, %v1973
        %v1979 = vlaneseq
        %v1980 = vshrl.u32 %v1979, 7
        %v1981 = vsub.s32 %v1406, %v1980
        %v1982 = vrot.slane %v1220, %v1981
        %v1983 = vsel %vm1411, %v1982, %v1978
        %v1984 = vlaneseq
        %v1985 = vshrl.u32 %v1984, 7
        %v1986 = vsub.s32 %v1413, %v1985
        %v1987 = vrot.slane %v1222, %v1986
        %v1988 = vsel %vm1418, %v1987, %v1983
        %v1989 = vlaneseq
        %v1990 = vshrl.u32 %v1989, 7
        %v1991 = vsub.s32 %v1420, %v1990
        %v1992 = vrot.slane %v1224, %v1991
        %v1993 = vsel %vm1425, %v1992, %v1988
        %v1994 = vlaneseq
        %v1995 = vshrl.u32 %v1994, 7
        %v1996 = vsub.s32 %v1427, %v1995
        %v1997 = vrot.slane %v1226, %v1996
        %v1998 = vsel %vm1432, %v1997, %v1993
        %v1999 = vlaneseq
        %v2000 = vshrl.u32 %v1999, 7
        %v2001 = vsub.s32 %v1434, %v2000
        %v2002 = vrot.slane %v1228, %v2001
        %v2003 = vsel %vm1439, %v2002, %v1998
        %v2004 = vlaneseq
        %v2005 = vshrl.u32 %v2004, 7
        %v2006 = vsub.s32 %v1441, %v2005
        %v2007 = vrot.slane %v1230, %v2006
        %v2008 = vsel %vm1446, %v2007, %v2003
        %v2009 = vlaneseq
        %v2010 = vshrl.u32 %v2009, 7
        %v2011 = vsub.s32 %v1448, %v2010
        %v2012 = vrot.slane %v1232, %v2011
        %v2013 = vsel %vm1453, %v2012, %v2008
        %v2014 = vlaneseq
        %v2015 = vshrl.u32 %v2014, 7
        %v2016 = vsub.s32 %v1455, %v2015
        %v2017 = vrot.slane %v1234, %v2016
        %v2018 = vsel %vm1460, %v2017, %v2013
        %v2019 = vlaneseq
        %v2020 = vshrl.u32 %v2019, 7
        %v2021 = vsub.s32 %v1462, %v2020
        %v2022 = vrot.slane %v1236, %v2021
        %v2023 = vsel %vm1467, %v2022, %v2018
        %v2024 = vlaneseq
        %v2025 = vshrl.u32 %v2024, 7
        %v2026 = vsub.s32 %v1469, %v2025
        %v2027 = vrot.slane %v1238, %v2026
        %v2028 = vsel %vm1474, %v2027, %v2023
        %vm2029 = vcmask 1041409
        %v2030 = vsel %vm2029, %v1554, %v1475
        %vm2031 = vcmask 1042434
        %v2032 = vsel %vm2031, %v1633, %v2030
        %vm2033 = vcmask 1043459
        %v2034 = vsel %vm2033, %v1712, %v2032
        %vm2035 = vcmask 1044484
        %v2036 = vsel %vm2035, %v1791, %v2034
        %vm2037 = vcmask 1045509
        %v2038 = vsel %vm2037, %v1870, %v2036
        %vm2039 = vcmask 1046534
        %v2040 = vsel %vm2039, %v1949, %v2038
        %vm2041 = vcmask 1047559
        %v2042 = vsel %vm2041, %v2028, %v2040
        %v2044 = vadd.f32 %v982, %v2042
        %2045 = vst [vmem:[#allocation2] sm:$0xff] %v2044
        %p2046 = scmp.eq.s32.totalorder %s38, 1
        // Predicated region
        $region93: #{tpu_custom_call.1} parent=55 // pred_check
          %p2047 = pneg %p2046
        $region94: #{tpu_custom_call.1} parent=55 // pred_check_branch
          %2049 = sbr.rel (%p2047) target = $region96
        $region95: #{tpu_custom_call.1} parent=55 // pred_region
          %v2050 = vcvt.s32.f32 %v488
          %v2051 = vmax.f32 %v2050, 1.0
          %v2052 = vld [vmem:[#allocation2] sm:$0xff]
          %v2053 = vld [vmem:[#allocation9] sm:$0xff]
          %v2054 = vld [vmem:[#allocation9 + $0x8] sm:$0xff]
          %v2055 = vld [vmem:[#allocation9 + $0x10] sm:$0xff]
          %v2056 = vld [vmem:[#allocation9 + $0x18] sm:$0xff]
          %v2057 = vld [vmem:[#allocation9 + $0x20] sm:$0xff]
          %v2058 = vld [vmem:[#allocation9 + $0x28] sm:$0xff]
          %v2059 = vld [vmem:[#allocation9 + $0x30] sm:$0xff]
          %v2060 = vld [vmem:[#allocation9 + $0x38] sm:$0xff]
          %v2061 = vld [vmem:[#allocation9 + $0x40] sm:$0xff]
          %v2062 = vld [vmem:[#allocation9 + $0x48] sm:$0xff]
          %v2063 = vld [vmem:[#allocation9 + $0x50] sm:$0xff]
          %v2064 = vld [vmem:[#allocation9 + $0x58] sm:$0xff]
          %v2065 = vld [vmem:[#allocation9 + $0x60] sm:$0xff]
          %v2066 = vld [vmem:[#allocation9 + $0x68] sm:$0xff]
          %v2067 = vld [vmem:[#allocation9 + $0x70] sm:$0xff]
          %v2068 = vld [vmem:[#allocation9 + $0x78] sm:$0xff]
          %v2069 = vld [vmem:[#allocation9 + $0x80] sm:$0xff]
          %v2070 = vld [vmem:[#allocation9 + $0x88] sm:$0xff]
          %v2071 = vld [vmem:[#allocation9 + $0x90] sm:$0xff]
          %v2072 = vld [vmem:[#allocation9 + $0x98] sm:$0xff]
          %v2073 = vld [vmem:[#allocation9 + $0xa0] sm:$0xff]
          %v2074 = vld [vmem:[#allocation9 + $0xa8] sm:$0xff]
          %v2075 = vld [vmem:[#allocation9 + $0xb0] sm:$0xff]
          %v2076 = vld [vmem:[#allocation9 + $0xb8] sm:$0xff]
          %v2077 = vld [vmem:[#allocation9 + $0xc0] sm:$0xff]
          %v2078 = vld [vmem:[#allocation9 + $0xc8] sm:$0xff]
          %v2079 = vld [vmem:[#allocation9 + $0xd0] sm:$0xff]
          %v2080 = vld [vmem:[#allocation9 + $0xd8] sm:$0xff]
          %v2081 = vld [vmem:[#allocation9 + $0xe0] sm:$0xff]
          %v2082 = vld [vmem:[#allocation9 + $0xe8] sm:$0xff]
          %v2083 = vld [vmem:[#allocation9 + $0xf0] sm:$0xff]
          %v2084 = vld [vmem:[#allocation9 + $0xf8] sm:$0xff]
          %2085 = vmatprep.subr.mxu0 %v2054
          %2086 = vmatpush1.msra.mxu0 %v2053
          %2087 = vmatprep.subr.mxu0 %v2056
          %2088 = vmatpush1.msra.mxu0 %v2055
          %2089 = vmatprep.subr.mxu0 %v2058
          %2090 = vmatpush1.msra.mxu0 %v2057
          %2091 = vmatprep.subr.mxu0 %v2060
          %2092 = vmatpush1.msra.mxu0 %v2059
          %2093 = vmatprep.subr.mxu0 %v2062
          %2094 = vmatpush1.msra.mxu0 %v2061
          %2095 = vmatprep.subr.mxu0 %v2064
          %2096 = vmatpush1.msra.mxu0 %v2063
          %2097 = vmatprep.subr.mxu0 %v2066
          %2098 = vmatpush1.msra.mxu0 %v2065
          %2099 = vmatprep.subr.mxu0 %v2068
          %2100 = vmatpush1.msra.mxu0 %v2067
          %2101 = vmatprep.subr.mxu0 %v2070
          %2102 = vmatpush1.msra.mxu0 %v2069
          %2103 = vmatprep.subr.mxu0 %v2072
          %2104 = vmatpush1.msra.mxu0 %v2071
          %2105 = vmatprep.subr.mxu0 %v2074
          %2106 = vmatpush1.msra.mxu0 %v2073
          %2107 = vmatprep.subr.mxu0 %v2076
          %2108 = vmatpush1.msra.mxu0 %v2075
          %2109 = vmatprep.subr.mxu0 %v2078
          %2110 = vmatpush1.msra.mxu0 %v2077
          %2111 = vmatprep.subr.mxu0 %v2080
          %2112 = vmatpush1.msra.mxu0 %v2079
          %2113 = vmatprep.subr.mxu0 %v2082
          %2114 = vmatpush1.msra.mxu0 %v2081
          %2115 = vmatprep.subr.mxu0 %v2084
          %2116 = vmatpush1.msra.mxu0 %v2083
          %2117 = vmatprep.subr.mxu0 0.0
          %2118 = vmatpush1.msra.mxu0 0.0
          %2119 = vmatprep.subr.mxu0 0.0
          %2120 = vmatpush1.msra.mxu0 0.0
          %2121 = vmatprep.subr.mxu0 0.0
          %2122 = vmatpush1.msra.mxu0 0.0
          %2123 = vmatprep.subr.mxu0 0.0
          %2124 = vmatpush1.msra.mxu0 0.0
          %2125 = vmatprep.subr.mxu0 0.0
          %2126 = vmatpush1.msra.mxu0 0.0
          %2127 = vmatprep.subr.mxu0 0.0
          %2128 = vmatpush1.msra.mxu0 0.0
          %2129 = vmatprep.subr.mxu0 0.0
          %2130 = vmatpush1.msra.mxu0 0.0
          %2131 = vmatprep.subr.mxu0 0.0
          %2132 = vmatpush1.msra.mxu0 0.0
          %2133 = vmatprep.subr.mxu0 0.0
          %2134 = vmatpush1.msra.mxu0 0.0
          %2135 = vmatprep.subr.mxu0 0.0
          %2136 = vmatpush1.msra.mxu0 0.0
          %2137 = vmatprep.subr.mxu0 0.0
          %2138 = vmatpush1.msra.mxu0 0.0
          %2139 = vmatprep.subr.mxu0 0.0
          %2140 = vmatpush1.msra.mxu0 0.0
          %2141 = vmatprep.subr.mxu0 0.0
          %2142 = vmatpush1.msra.mxu0 0.0
          %2143 = vmatprep.subr.mxu0 0.0
          %2144 = vmatpush1.msra.mxu0 0.0
          %2145 = vmatprep.subr.mxu0 0.0
          %2146 = vmatpush1.msra.mxu0 0.0
          %2147 = vmatprep.subr.mxu0 0.0
          %2148 = vmatpush1.msra.mxu0 0.0
          %2149 = vmatprep.mubr.f32.mxu0 0.0
          %2150 = vmatmul.mubr.f32.gmra.mrb[0].mxu0 %v2052
          %v2151 = vpop.f32.mrb[0].mxu0
          %v2152 = vadd.f32 0.0, %v2151
          %v2153 = vpop.f32.mrb[0].mxu0
          %v2154 = vadd.f32 0.0, %v2153
          %2155 = vdwg.mxu0
          %2157 = vset.pattern.permute.xlu0 0
          %2158 = vperm.xlu0 %2157, %v2051
          %v2159 = vpop.permute.xlu0 %2158
          %v2161 = vrcp.pop %v2159
          %v2162 = vmul.f32 %v2152, %v2161
          %v2163 = vmul.f32 %v2154, %v2161
          %v2164 = vld [vmem:[#allocation10] sm:$0xff]
          %v2165 = vld [vmem:[#allocation10 + $0x8] sm:$0xff]
          %v2166 = vld [vmem:[#allocation10 + $0x10] sm:$0xff]
          %v2167 = vld [vmem:[#allocation10 + $0x18] sm:$0xff]
          %v2168 = vld [vmem:[#allocation10 + $0x20] sm:$0xff]
          %v2169 = vld [vmem:[#allocation10 + $0x28] sm:$0xff]
          %v2170 = vld [vmem:[#allocation10 + $0x30] sm:$0xff]
          %v2171 = vld [vmem:[#allocation10 + $0x38] sm:$0xff]
          %v2172 = vld [vmem:[#allocation10 + $0x40] sm:$0xff]
          %v2173 = vld [vmem:[#allocation10 + $0x48] sm:$0xff]
          %v2174 = vld [vmem:[#allocation10 + $0x50] sm:$0xff]
          %v2175 = vld [vmem:[#allocation10 + $0x58] sm:$0xff]
          %v2176 = vld [vmem:[#allocation10 + $0x60] sm:$0xff]
          %v2177 = vld [vmem:[#allocation10 + $0x68] sm:$0xff]
          %v2178 = vld [vmem:[#allocation10 + $0x70] sm:$0xff]
          %v2179 = vld [vmem:[#allocation10 + $0x78] sm:$0xff]
          %v2180 = vld [vmem:[#allocation10 + $0x80] sm:$0xff]
          %v2181 = vld [vmem:[#allocation10 + $0x88] sm:$0xff]
          %v2182 = vld [vmem:[#allocation10 + $0x90] sm:$0xff]
          %v2183 = vld [vmem:[#allocation10 + $0x98] sm:$0xff]
          %v2184 = vld [vmem:[#allocation10 + $0xa0] sm:$0xff]
          %v2185 = vld [vmem:[#allocation10 + $0xa8] sm:$0xff]
          %v2186 = vld [vmem:[#allocation10 + $0xb0] sm:$0xff]
          %v2187 = vld [vmem:[#allocation10 + $0xb8] sm:$0xff]
          %v2188 = vld [vmem:[#allocation10 + $0xc0] sm:$0xff]
          %v2189 = vld [vmem:[#allocation10 + $0xc8] sm:$0xff]
          %v2190 = vld [vmem:[#allocation10 + $0xd0] sm:$0xff]
          %v2191 = vld [vmem:[#allocation10 + $0xd8] sm:$0xff]
          %v2192 = vld [vmem:[#allocation10 + $0xe0] sm:$0xff]
          %v2193 = vld [vmem:[#allocation10 + $0xe8] sm:$0xff]
          %v2194 = vld [vmem:[#allocation10 + $0xf0] sm:$0xff]
          %v2195 = vld [vmem:[#allocation10 + $0xf8] sm:$0xff]
          %v2196 = vld [vmem:[#allocation10 + $0x100] sm:$0xff]
          %v2197 = vld [vmem:[#allocation10 + $0x108] sm:$0xff]
          %v2198 = vld [vmem:[#allocation10 + $0x110] sm:$0xff]
          %v2199 = vld [vmem:[#allocation10 + $0x118] sm:$0xff]
          %v2200 = vld [vmem:[#allocation10 + $0x120] sm:$0xff]
          %v2201 = vld [vmem:[#allocation10 + $0x128] sm:$0xff]
          %v2202 = vld [vmem:[#allocation10 + $0x130] sm:$0xff]
          %v2203 = vld [vmem:[#allocation10 + $0x138] sm:$0xff]
          %v2204 = vld [vmem:[#allocation10 + $0x140] sm:$0xff]
          %v2205 = vld [vmem:[#allocation10 + $0x148] sm:$0xff]
          %v2206 = vld [vmem:[#allocation10 + $0x150] sm:$0xff]
          %v2207 = vld [vmem:[#allocation10 + $0x158] sm:$0xff]
          %v2208 = vld [vmem:[#allocation10 + $0x160] sm:$0xff]
          %v2209 = vld [vmem:[#allocation10 + $0x168] sm:$0xff]
          %v2210 = vld [vmem:[#allocation10 + $0x170] sm:$0xff]
          %v2211 = vld [vmem:[#allocation10 + $0x178] sm:$0xff]
          %v2212 = vld [vmem:[#allocation10 + $0x180] sm:$0xff]
          %v2213 = vld [vmem:[#allocation10 + $0x188] sm:$0xff]
          %v2214 = vld [vmem:[#allocation10 + $0x190] sm:$0xff]
          %v2215 = vld [vmem:[#allocation10 + $0x198] sm:$0xff]
          %v2216 = vld [vmem:[#allocation10 + $0x1a0] sm:$0xff]
          %v2217 = vld [vmem:[#allocation10 + $0x1a8] sm:$0xff]
          %v2218 = vld [vmem:[#allocation10 + $0x1b0] sm:$0xff]
          %v2219 = vld [vmem:[#allocation10 + $0x1b8] sm:$0xff]
          %v2220 = vld [vmem:[#allocation10 + $0x1c0] sm:$0xff]
          %v2221 = vld [vmem:[#allocation10 + $0x1c8] sm:$0xff]
          %v2222 = vld [vmem:[#allocation10 + $0x1d0] sm:$0xff]
          %v2223 = vld [vmem:[#allocation10 + $0x1d8] sm:$0xff]
          %v2224 = vld [vmem:[#allocation10 + $0x1e0] sm:$0xff]
          %v2225 = vld [vmem:[#allocation10 + $0x1e8] sm:$0xff]
          %v2226 = vld [vmem:[#allocation10 + $0x1f0] sm:$0xff]
          %v2227 = vld [vmem:[#allocation10 + $0x1f8] sm:$0xff]
          %v2228 = vld [vmem:[#allocation12] sm:$0x3]
          %v2230 = vlaneseq
          %v2231 = vshrl.u32 %v2230, 7
          %v2232 = vsub.s32 0, %v2231
          %v2233 = vrot.slane %v2228, %v2232
          %v2234 = vlaneseq
          %v2235 = vshrl.u32 %v2234, 7
          %v2236 = vsub.s32 1, %v2235
          %v2237 = vrot.slane %v2228, %v2236
          %2240 = vmatprep.subr.mxu0 %v2165
          %2241 = vmatpush1.msra.mxu0 %v2164
          %2242 = vmatprep.subr.mxu0 %v2167
          %2243 = vmatpush1.msra.mxu0 %v2166
          %2244 = vmatprep.subr.mxu0 %v2169
          %2245 = vmatpush1.msra.mxu0 %v2168
          %2246 = vmatprep.subr.mxu0 %v2171
          %2247 = vmatpush1.msra.mxu0 %v2170
          %2248 = vmatprep.subr.mxu0 %v2173
          %2249 = vmatpush1.msra.mxu0 %v2172
          %2250 = vmatprep.subr.mxu0 %v2175
          %2251 = vmatpush1.msra.mxu0 %v2174
          %2252 = vmatprep.subr.mxu0 %v2177
          %2253 = vmatpush1.msra.mxu0 %v2176
          %2254 = vmatprep.subr.mxu0 %v2179
          %2255 = vmatpush1.msra.mxu0 %v2178
          %2256 = vmatprep.subr.mxu0 %v2181
          %2257 = vmatpush1.msra.mxu0 %v2180
          %2258 = vmatprep.subr.mxu0 %v2183
          %2259 = vmatpush1.msra.mxu0 %v2182
          %2260 = vmatprep.subr.mxu0 %v2185
          %2261 = vmatpush1.msra.mxu0 %v2184
          %2262 = vmatprep.subr.mxu0 %v2187
          %2263 = vmatpush1.msra.mxu0 %v2186
          %2264 = vmatprep.subr.mxu0 %v2189
          %2265 = vmatpush1.msra.mxu0 %v2188
          %2266 = vmatprep.subr.mxu0 %v2191
          %2267 = vmatpush1.msra.mxu0 %v2190
          %2268 = vmatprep.subr.mxu0 %v2193
          %2269 = vmatpush1.msra.mxu0 %v2192
          %2270 = vmatprep.subr.mxu0 %v2195
          %2271 = vmatpush1.msra.mxu0 %v2194
          %2272 = vmatprep.subr.mxu0 %v2197
          %2273 = vmatpush1.msra.mxu0 %v2196
          %2274 = vmatprep.subr.mxu0 %v2199
          %2275 = vmatpush1.msra.mxu0 %v2198
          %2276 = vmatprep.subr.mxu0 %v2201
          %2277 = vmatpush1.msra.mxu0 %v2200
          %2278 = vmatprep.subr.mxu0 %v2203
          %2279 = vmatpush1.msra.mxu0 %v2202
          %2280 = vmatprep.subr.mxu0 %v2205
          %2281 = vmatpush1.msra.mxu0 %v2204
          %2282 = vmatprep.subr.mxu0 %v2207
          %2283 = vmatpush1.msra.mxu0 %v2206
          %2284 = vmatprep.subr.mxu0 %v2209
          %2285 = vmatpush1.msra.mxu0 %v2208
          %2286 = vmatprep.subr.mxu0 %v2211
          %2287 = vmatpush1.msra.mxu0 %v2210
          %2288 = vmatprep.subr.mxu0 %v2213
          %2289 = vmatpush1.msra.mxu0 %v2212
          %2290 = vmatprep.subr.mxu0 %v2215
          %2291 = vmatpush1.msra.mxu0 %v2214
          %2292 = vmatprep.subr.mxu0 %v2217
          %2293 = vmatpush1.msra.mxu0 %v2216
          %2294 = vmatprep.subr.mxu0 %v2219
          %2295 = vmatpush1.msra.mxu0 %v2218
          %2296 = vmatprep.subr.mxu0 %v2221
          %2297 = vmatpush1.msra.mxu0 %v2220
          %2298 = vmatprep.subr.mxu0 %v2223
          %2299 = vmatpush1.msra.mxu0 %v2222
          %2300 = vmatprep.subr.mxu0 %v2225
          %2301 = vmatpush1.msra.mxu0 %v2224
          %2302 = vmatprep.subr.mxu0 %v2227
          %2303 = vmatpush1.msra.mxu0 %v2226
          %2304 = vmatprep.mubr.f32.mxu0 %v2163
          %2305 = vmatmul.mubr.f32.gmra.mrb[0].mxu0 %v2162
          %v2306 = vpop.f32.mrb[0].mxu0
          %v2307 = vadd.f32 %v2233, %v2306
          %v2308 = vpop.f32.mrb[0].mxu0
          %v2309 = vadd.f32 %v2237, %v2308
          %2310 = vdwg.mxu0
          %v2311 = vtanh.pop %v2307
          %v2312 = vtanh.pop %v2309
          %v2313 = vld [vmem:[#allocation13] sm:$0xff]
          %v2314 = vld [vmem:[#allocation13 + $0x8] sm:$0xff]
          %v2315 = vld [vmem:[#allocation13 + $0x10] sm:$0xff]
          %v2316 = vld [vmem:[#allocation13 + $0x18] sm:$0xff]
          %v2317 = vld [vmem:[#allocation13 + $0x20] sm:$0xff]
          %v2318 = vld [vmem:[#allocation13 + $0x28] sm:$0xff]
          %v2319 = vld [vmem:[#allocation13 + $0x30] sm:$0xff]
          %v2320 = vld [vmem:[#allocation13 + $0x38] sm:$0xff]
          %v2321 = vld [vmem:[#allocation13 + $0x40] sm:$0xff]
          %v2322 = vld [vmem:[#allocation13 + $0x48] sm:$0xff]
          %v2323 = vld [vmem:[#allocation13 + $0x50] sm:$0xff]
          %v2324 = vld [vmem:[#allocation13 + $0x58] sm:$0xff]
          %v2325 = vld [vmem:[#allocation13 + $0x60] sm:$0xff]
          %v2326 = vld [vmem:[#allocation13 + $0x68] sm:$0xff]
          %v2327 = vld [vmem:[#allocation13 + $0x70] sm:$0xff]
          %v2328 = vld [vmem:[#allocation13 + $0x78] sm:$0xff]
          %v2329 = vld [vmem:[#allocation13 + $0x80] sm:$0xff]
          %v2330 = vld [vmem:[#allocation13 + $0x88] sm:$0xff]
          %v2331 = vld [vmem:[#allocation13 + $0x90] sm:$0xff]
          %v2332 = vld [vmem:[#allocation13 + $0x98] sm:$0xff]
          %v2333 = vld [vmem:[#allocation13 + $0xa0] sm:$0xff]
          %v2334 = vld [vmem:[#allocation13 + $0xa8] sm:$0xff]
          %v2335 = vld [vmem:[#allocation13 + $0xb0] sm:$0xff]
          %v2336 = vld [vmem:[#allocation13 + $0xb8] sm:$0xff]
          %v2337 = vld [vmem:[#allocation13 + $0xc0] sm:$0xff]
          %v2338 = vld [vmem:[#allocation13 + $0xc8] sm:$0xff]
          %v2339 = vld [vmem:[#allocation13 + $0xd0] sm:$0xff]
          %v2340 = vld [vmem:[#allocation13 + $0xd8] sm:$0xff]
          %v2341 = vld [vmem:[#allocation13 + $0xe0] sm:$0xff]
          %v2342 = vld [vmem:[#allocation13 + $0xe8] sm:$0xff]
          %v2343 = vld [vmem:[#allocation13 + $0xf0] sm:$0xff]
          %v2344 = vld [vmem:[#allocation13 + $0xf8] sm:$0xff]
          %v2345 = vld [vmem:[#allocation15] sm:$0x1]
          %v2347 = vlaneseq
          %v2348 = vshrl.u32 %v2347, 7
          %v2349 = vsub.s32 0, %v2348
          %v2350 = vrot.slane %v2345, %v2349
          %2352 = vmatprep.subr.mxu0 0.0
          %2353 = vmatpush1.msra.mxu0 %v2313
          %2354 = vmatprep.subr.mxu0 0.0
          %2355 = vmatpush1.msra.mxu0 %v2314
          %2356 = vmatprep.subr.mxu0 0.0
          %2357 = vmatpush1.msra.mxu0 %v2315
          %2358 = vmatprep.subr.mxu0 0.0
          %2359 = vmatpush1.msra.mxu0 %v2316
          %2360 = vmatprep.subr.mxu0 0.0
          %2361 = vmatpush1.msra.mxu0 %v2317
          %2362 = vmatprep.subr.mxu0 0.0
          %2363 = vmatpush1.msra.mxu0 %v2318
          %2364 = vmatprep.subr.mxu0 0.0
          %2365 = vmatpush1.msra.mxu0 %v2319
          %2366 = vmatprep.subr.mxu0 0.0
          %2367 = vmatpush1.msra.mxu0 %v2320
          %2368 = vmatprep.subr.mxu0 0.0
          %2369 = vmatpush1.msra.mxu0 %v2321
          %2370 = vmatprep.subr.mxu0 0.0
          %2371 = vmatpush1.msra.mxu0 %v2322
          %2372 = vmatprep.subr.mxu0 0.0
          %2373 = vmatpush1.msra.mxu0 %v2323
          %2374 = vmatprep.subr.mxu0 0.0
          %2375 = vmatpush1.msra.mxu0 %v2324
          %2376 = vmatprep.subr.mxu0 0.0
          %2377 = vmatpush1.msra.mxu0 %v2325
          %2378 = vmatprep.subr.mxu0 0.0
          %2379 = vmatpush1.msra.mxu0 %v2326
          %2380 = vmatprep.subr.mxu0 0.0
          %2381 = vmatpush1.msra.mxu0 %v2327
          %2382 = vmatprep.subr.mxu0 0.0
          %2383 = vmatpush1.msra.mxu0 %v2328
          %2384 = vmatprep.subr.mxu0 0.0
          %2385 = vmatpush1.msra.mxu0 %v2329
          %2386 = vmatprep.subr.mxu0 0.0
          %2387 = vmatpush1.msra.mxu0 %v2330
          %2388 = vmatprep.subr.mxu0 0.0
          %2389 = vmatpush1.msra.mxu0 %v2331
          %2390 = vmatprep.subr.mxu0 0.0
          %2391 = vmatpush1.msra.mxu0 %v2332
          %2392 = vmatprep.subr.mxu0 0.0
          %2393 = vmatpush1.msra.mxu0 %v2333
          %2394 = vmatprep.subr.mxu0 0.0
          %2395 = vmatpush1.msra.mxu0 %v2334
          %2396 = vmatprep.subr.mxu0 0.0
          %2397 = vmatpush1.msra.mxu0 %v2335
          %2398 = vmatprep.subr.mxu0 0.0
          %2399 = vmatpush1.msra.mxu0 %v2336
          %2400 = vmatprep.subr.mxu0 0.0
          %2401 = vmatpush1.msra.mxu0 %v2337
          %2402 = vmatprep.subr.mxu0 0.0
          %2403 = vmatpush1.msra.mxu0 %v2338
          %2404 = vmatprep.subr.mxu0 0.0
          %2405 = vmatpush1.msra.mxu0 %v2339
          %2406 = vmatprep.subr.mxu0 0.0
          %2407 = vmatpush1.msra.mxu0 %v2340
          %2408 = vmatprep.subr.mxu0 0.0
          %2409 = vmatpush1.msra.mxu0 %v2341
          %2410 = vmatprep.subr.mxu0 0.0
          %2411 = vmatpush1.msra.mxu0 %v2342
          %2412 = vmatprep.subr.mxu0 0.0
          %2413 = vmatpush1.msra.mxu0 %v2343
          %2414 = vmatprep.subr.mxu0 0.0
          %2415 = vmatpush1.msra.mxu0 %v2344
          %2416 = vmatprep.mubr.f32.mxu0 %v2312
          %2417 = vmatmul.mubr.f32.gmra.mrb[0].mxu0 %v2311
          %v2418 = vpop.f32.mrb[0].mxu0
          %v2419 = vadd.f32 %v2350, %v2418
          %v2420 = vpop.f32.mrb[0].mxu0
          %2421 = vdwg.mxu0
          %v2422 = vmax.f32 %v2419, 0.0
          %v2423 = vld [vmem:[#allocation16] sm:$0x1]
          %v2425 = vlaneseq
          %v2426 = vshrl.u32 %v2425, 7
          %v2427 = vsub.s32 0, %v2426
          %v2428 = vrot.slane %v2423, %v2427
          %v2430 = vmul.f32 %v2422, %v2428
          %2431 = vadd.xlane.f32.xlu0 %v2430
          %v2432 = vpop.xlane.xlu0 %2431
          %s2433 = sld [smem:[#allocation3]]
          %v2434 = vstv %s2433
          %v2435 = vadd.f32 %v2432, %v2434
          %v2436 = vxor.u32 %v2435, 2147483648
          %v2437 = vmul.f32 %v2436, 1.442695
          %v2438 = vpow.pop %v2437
          %v2439 = vadd.f32 %v2438, 1.0
          %v2440 = vrcp.pop %v2439
          %v2441 = vmul.f32 1.0, %v2440
          %2442 = vst [vmem:[%s482] sm:$0xff] %v2441
        $region96: #{tpu_custom_call.1} parent=55 // pred_fallthru
          _
        %s2443 = sand.u32 %s254, 1
        %s2444 = scalar_lea.sflag [#allocation6], %s2443
        %s2445 = sand.u32 %s254, 1
        %s2446 = smul.addr %s2445, 8
        %s2447 = scalar_lea.vmem [#allocation18], %s2446
        // Predicated region
        $region97: #{tpu_custom_call.1} parent=55 // pred_check
          %p2448 = pneg %p264
        $region98: #{tpu_custom_call.1} parent=55 // pred_check_branch
          %2450 = sbr.rel (%p2448) target = $region100
        $region99: #{tpu_custom_call.1} parent=55 // pred_region
          %s2452 = ssub.s32 128, 128
          %2453 = vsyncadd %s2444, %s2452
          %s2454 = smul.addr %s37, 128
          %s2455 = scalar_lea.hbm %s9, %s2454
          %s2457 = sshll.u32 %s2447, 4
          %s2458 = int_to_ptr.vmem [resolvable:$true] %s2457
          %2460 = dma.vmem_to_hbm [thread:$0]  %s2458, 128, %s2455, %s2444
        $region100: #{tpu_custom_call.1} parent=55 // pred_fallthru
          _
      $region56: #{tpu_custom_call.1} parent=5 // pred_fallthru
        _
      %p2461 = scmp.le.s32.totalorder 2, %s28
      // Predicated region
      $region101: #{tpu_custom_call.1} parent=5 // pred_check
        %p2462 = pneg %p2461
      $region102: #{tpu_custom_call.1} parent=5 // pred_check_branch
        %2464 = sbr.rel (%p2462) target = $region104
      $region103: #{tpu_custom_call.1} parent=5 // pred_region
        %s2465 = ssub.s32 %s28, 2
        // Predicated region
        $region105: #{tpu_custom_call.1} parent=103 // pred_check
          %p2466 = pneg %p270
        $region106: #{tpu_custom_call.1} parent=103 // pred_check_branch
          %2468 = sbr.rel (%p2466) target = $region108
        $region107: #{tpu_custom_call.1} parent=103 // pred_region
          %s2469 = sand.u32 %s255, 1
          %s2470 = scalar_lea.sflag [#allocation6], %s2469
          %s2471 = sand.u32 %s255, 1
          %s2472 = smul.addr %s2471, 8
          %s2473 = scalar_lea.vmem [#allocation18], %s2472
          %2474 = dma.done %s2470, 128
        $region108: #{tpu_custom_call.1} parent=103 // pred_fallthru
          _
      $region104: #{tpu_custom_call.1} parent=5 // pred_fallthru
        _
    $region6: #{tpu_custom_call.1} parent=1 // loop_footer
      %s32 = sadd.s32 1, %s28
    $region7: #{tpu_custom_call.1} parent=1 // loop_footer_branch
      %27 = sbr.rel target = $region3
    $region8: #{tpu_custom_call.1} parent=1 // loop_exit
      _
    %2475 = vsyncpa [#allocation5], 1
    %s2476 = scalar_lea.sflag [#allocation5], 1
    %2477 = vsyncpa %s2476, 1
    %2478 = vsyncpa [#allocation8], 1
    %s2479 = scalar_lea.sflag [#allocation8], 1
    %2480 = vsyncpa %s2479, 1
    %2481 = vsyncpa [#allocation11], 1
    %2482 = vsyncpa [#allocation14], 1
    %2483 = vsyncpa [#allocation17], 1
    %2484 = vsyncpa [#allocation6], 1
    %s2485 = scalar_lea.sflag [#allocation6], 1
    %2486 = vsyncpa %s2485, 1

</llo_original>
